<compile_context>
chip_gen: v7x
topology: tpu7x:2x2x1
jax: 0.10.0
libtpu: 0.0.40
codegen_flags: <defaults>
</compile_context>

<pallas_src>
import functools

import jax
import jax.numpy as jnp
from jax import lax
from jax.experimental import pallas as pl
from jax.experimental.pallas import tpu as pltpu


_LANE = 128
_VMEM_TILE_BUDGET = 8 * 1024 * 1024      # target per-step working set
_VMEM_LIMIT_BYTES = 48 * 1024 * 1024     # scoped VMEM; fits v5e/v6e/v7x


def _round_up(x, m):
    return (x + m - 1) // m * m


def _pick_row_tile(n_rows, bytes_per_row, budget=_VMEM_TILE_BUDGET):
    """Largest divisor of n_rows whose row tile fits the VMEM budget."""
    cap = max(1, min(n_rows, budget // max(1, bytes_per_row)))
    for th in range(cap, 0, -1):
        if n_rows % th == 0:
            return th
    return 1


def conv2d_module(x_nchw, weight_oihw, bias, gamma, beta, *,
                  padding=1, stride=1, dilation=1,
                  negative_slope=0.1, eps=1e-5, act=True,
                  compute_dtype=jnp.bfloat16):
    """Forward of the `Conv2D` module.  x_nchw: (N, Cin, H, W) -> (N, Cout, H', W')."""
    if stride != 1:
        # TODO(synk): stride > 1 not implemented (module default is stride=1).
        raise NotImplementedError("stride must be 1")

    N, Cin, H, W = x_nchw.shape
    Cout, Cin_w, KH, KW = weight_oihw.shape
    assert Cin_w == Cin

    halo = dilation * (KH - 1)                       # extra input rows per tile
    H_out = H + 2 * padding - halo
    W_out = W + 2 * padding - dilation * (KW - 1)
    Hp, Wp = H + 2 * padding, W + 2 * padding
    Cp = _round_up(Cout, _LANE)                      # lane-dense channel dim (MXU / z store)
    KKC = KH * KW * Cin                              # folded contraction depth
    in_bytes = jnp.dtype(compute_dtype).itemsize

    # ---- wrapper glue (layout only) -----------------------------------------
    # TODO(synk): keep the surrounding model NHWC end-to-end so this transpose
    # (and the one on the output) disappears; here we must honor the NCHW API.
    x_nhwc = jnp.transpose(x_nchw, (0, 2, 3, 1)).astype(compute_dtype)
    x_pad = jnp.pad(x_nhwc, ((0, 0), (padding, padding),
                             (padding, padding), (0, 0)))

    # OIHW -> (KH*KW*Cin, Cout_pad): single weight matrix for the folded matmul.
    w_mat = jnp.transpose(weight_oihw, (2, 3, 1, 0)).reshape(KKC, Cout)
    w_mat = jnp.pad(w_mat, ((0, 0), (0, Cp - Cout))).astype(compute_dtype)

    # Conv bias is cancelled exactly by the BN batch-mean subtraction -> drop it.
    del bias

    # ============================ pass 1: conv + BN partial stats =============
    row_bytes = ((Wp * Cin * in_bytes) * (2 + KH * KW)   # x tile (dbl-buf) + tap temps
                 + W_out * KKC * in_bytes                 # folded patch
                 + W_out * Cp * 4 * 3)                    # z temp + z out block (dbl-buf)
    TH = _pick_row_tile(H_out, row_bytes)
    T = H_out // TH

    def conv_stats_kernel(*refs):
        x_ref = refs[0]
        halo_refs = refs[1:1 + halo]
        w_ref = refs[1 + halo]
        z_ref, st_ref = refs[2 + halo], refs[3 + halo]

        # (TH + halo, Wp, Cin) input window for this row tile.
        parts = [x_ref[0]] + [h[0] for h in halo_refs]
        x_win = jnp.concatenate(parts, axis=0) if halo else x_ref[0]

        # Gather all KH*KW taps once -> ONE matmul with K = KH*KW*Cin
        # (instead of KH*KW shallow K=Cin matmuls with per-tap reshapes).
        taps = []
        for kh in range(KH):
            for kw in range(KW):
                oh, ow = kh * dilation, kw * dilation
                taps.append(x_win[oh:oh + TH, ow:ow + W_out, :])
        patch = jnp.concatenate(taps, axis=-1).reshape(TH * W_out, KKC)

        z = jnp.dot(patch, w_ref[...], preferred_element_type=jnp.float32)

        # Lane-dense (Cp multiple of 128) f32 store of the conv output tile.
        z_ref[...] = z.reshape(1, TH, W_out, Cp)

        # Per-tile BatchNorm partial statistics (f32).
        s1 = jnp.sum(z, axis=0, keepdims=True)
        s2 = jnp.sum(z * z, axis=0, keepdims=True)
        st_ref[...] = jnp.concatenate([s1, s2], axis=0).reshape(1, 1, 2, Cp)

    x_specs = [pl.BlockSpec((1, TH, Wp, Cin), lambda n, t: (n, t, 0, 0))]
    for j in range(halo):
        # Single-row halo blocks (block size 1 => block index == row index).
        x_specs.append(pl.BlockSpec(
            (1, 1, Wp, Cin), lambda n, t, j=j: (n, t * TH + TH + j, 0, 0)))
    w_spec = pl.BlockSpec((KKC, Cp), lambda n, t: (0, 0))

    z_full, stats = pl.pallas_call(
        conv_stats_kernel,
        grid=(N, T),
        in_specs=x_specs + [w_spec],
        out_specs=(
            pl.BlockSpec((1, TH, W_out, Cp), lambda n, t: (n, t, 0, 0)),
            pl.BlockSpec((1, 1, 2, Cp), lambda n, t: (n, t, 0, 0)),
        ),
        out_shape=(
            jax.ShapeDtypeStruct((N, H_out, W_out, Cp), jnp.float32),
            jax.ShapeDtypeStruct((N, T, 2, Cp), jnp.float32),
        ),
        compiler_params=pltpu.CompilerParams(
            dimension_semantics=("parallel", "parallel"),
            vmem_limit_bytes=_VMEM_LIMIT_BYTES),
    )(*([x_pad] * (1 + halo) + [w_mat]))

    # ---- fold batch statistics into one multiply-add (tiny, f32) -------------
    s = jnp.sum(stats, axis=(0, 1))                      # (2, Cp)
    count = N * H_out * W_out
    mean = s[0] / count
    var = jnp.maximum(s[1] / count - mean * mean, 0.0)   # clamp E[z^2]-E[z]^2 >= 0
    gamma_p = jnp.pad(gamma.astype(jnp.float32), (0, Cp - Cout), constant_values=1.0)
    beta_p = jnp.pad(beta.astype(jnp.float32), (0, Cp - Cout))
    scale = (gamma_p * lax.rsqrt(var + eps)).reshape(1, Cp)
    shift = (beta_p - mean * scale[0]).reshape(1, Cp)

    # ============================ pass 2: fused affine + LeakyReLU ============
    row_bytes2 = W_out * (Cp * 4 * 3 + Cout * 4 * 2)     # z in (dbl) + temp + out (dbl)
    TH2 = _pick_row_tile(H_out, row_bytes2)
    T2 = H_out // TH2

    def affine_act_kernel(z_ref, sc_ref, sh_ref, o_ref):
        y = z_ref[...] * sc_ref[...] + sh_ref[...]
        if act:
            y = jnp.where(y > 0, y, negative_slope * y)
        # Strip the lane padding in-kernel: only the real Cout channels are
        # written back to HBM (no-op slice when Cout is a multiple of 128).
        o_ref[...] = y[..., :Cout].astype(o_ref.dtype)

    y_out = pl.pallas_call(
        affine_act_kernel,
        grid=(N, T2),
        in_specs=[
            pl.BlockSpec((1, TH2, W_out, Cp), lambda n, t: (n, t, 0, 0)),
            pl.BlockSpec((1, Cp), lambda n, t: (0, 0)),
            pl.BlockSpec((1, Cp), lambda n, t: (0, 0)),
        ],
        out_specs=pl.BlockSpec((1, TH2, W_out, Cout), lambda n, t: (n, t, 0, 0)),
        out_shape=jax.ShapeDtypeStruct((N, H_out, W_out, Cout), jnp.float32),
        compiler_params=pltpu.CompilerParams(
            dimension_semantics=("parallel", "parallel"),
            vmem_limit_bytes=_VMEM_LIMIT_BYTES),
    )(z_full, scale, shift)

    # Back to the PyTorch NCHW convention (layout plumbing only).
    return jnp.transpose(y_out, (0, 3, 1, 2))


def reference(x_nchw, weight_oihw, bias, gamma, beta, *,
              padding=1, dilation=1, negative_slope=0.1, eps=1e-5, act=True,
              conv_dtype=jnp.float32):
    """Pure-JAX reference: Conv2d -> train-mode BatchNorm2d -> LeakyReLU.

    conv_dtype lets the reference mirror the kernel's matmul input precision
    (bf16 products, f32 accumulation) for a tight comparison of the bf16 path.
    """
    z = lax.conv_general_dilated(
        x_nchw.astype(conv_dtype), weight_oihw.astype(conv_dtype),
        window_strides=(1, 1),
        padding=[(padding, padding), (padding, padding)],
        rhs_dilation=(dilation, dilation),
        dimension_numbers=("NCHW", "OIHW", "NCHW"),
        preferred_element_type=jnp.float32,
        precision=lax.Precision.HIGHEST)
    z = z + bias.reshape(1, -1, 1, 1).astype(jnp.float32)
    mean = jnp.mean(z, axis=(0, 2, 3), keepdims=True)
    var = jnp.mean((z - mean) ** 2, axis=(0, 2, 3), keepdims=True)
    y = (z - mean) * lax.rsqrt(var + eps) * gamma.reshape(1, -1, 1, 1) \
        + beta.reshape(1, -1, 1, 1)
    if act:
        y = jnp.where(y > 0, y, negative_slope * y)
    return y


if __name__ == "__main__":
    key = jax.random.PRNGKey(0)
    k_x, k_w, k_b, k_g, k_bt = jax.random.split(key, 5)

    # Small shapes consistent with the module: N=2, in_c=4, out_c=8, 16x16.
    N, Cin, H, W = 2, 4, 16, 16
    Cout, K = 8, 3

    x = jax.random.normal(k_x, (N, Cin, H, W), dtype=jnp.float32)
    weight = jax.random.normal(k_w, (Cout, Cin, K, K), dtype=jnp.float32) * 0.1
    bias = jax.random.normal(k_b, (Cout,), dtype=jnp.float32) * 0.1
    gamma = 1.0 + 0.1 * jax.random.normal(k_g, (Cout,), dtype=jnp.float32)
    beta = 0.1 * jax.random.normal(k_bt, (Cout,), dtype=jnp.float32)

    # Default bf16-matmul path, checked against a reference whose conv inputs
    # are also bf16 (same product precision, f32 accumulation) -> tight check.
    fwd_bf16 = jax.jit(functools.partial(conv2d_module,
                                         compute_dtype=jnp.bfloat16))
    out_bf16 = jax.block_until_ready(fwd_bf16(x, weight, bias, gamma, beta))
    ref_bf16 = reference(x, weight, bias, gamma, beta, conv_dtype=jnp.bfloat16)
    assert out_bf16.shape == (N, Cout, H, W), out_bf16.shape
    assert jnp.allclose(out_bf16, ref_bf16, atol=5e-3, rtol=5e-3), \
        float(jnp.max(jnp.abs(out_bf16 - ref_bf16)))

    # f32-matmul path, checked against the exact f32 PyTorch-semantics
    # reference (tolerance covers the MXU's f32 emulation scheme).
    fwd_f32 = jax.jit(functools.partial(conv2d_module,
                                        compute_dtype=jnp.float32))
    out_f32 = jax.block_until_ready(fwd_f32(x, weight, bias, gamma, beta))
    ref_f32 = reference(x, weight, bias, gamma, beta, conv_dtype=jnp.float32)
    assert out_f32.shape == (N, Cout, H, W), out_f32.shape
    assert jnp.allclose(out_f32, ref_f32, atol=5e-2, rtol=5e-2), \
        float(jnp.max(jnp.abs(out_f32 - ref_f32)))

    print("KERNEL_OK")
</pallas_src>

<mosaic_0001>
module attributes {stable_mosaic.version = 11 : i64} {
  func.func @conv_stats_kernel(%arg0: i32, %arg1: i32, %arg2: memref<1x16x18x4xbf16, #tpu.memory_space<vmem>>, %arg3: memref<1x1x18x4xbf16, #tpu.memory_space<vmem>>, %arg4: memref<1x1x18x4xbf16, #tpu.memory_space<vmem>>, %arg5: memref<36x128xbf16, #tpu.memory_space<vmem>>, %arg6: memref<1x16x16x128xf32, #tpu.memory_space<vmem>>, %arg7: memref<1x1x2x128xf32, #tpu.memory_space<vmem>>) attributes {dimension_semantics = [#tpu.dimension_semantics<parallel>, #tpu.dimension_semantics<parallel>], iteration_bounds = array<i64: 2, 1>, scalar_prefetch = 0 : i64, scratch_operands = 0 : i64, tpu.core_type = #tpu.core_type<tc>, window_params = [{transform_indices = @transform_0, window_bounds = array<i64: 1, 16, 18, 4>}, {transform_indices = @transform_1, window_bounds = array<i64: 1, 1, 18, 4>}, {transform_indices = @transform_2, window_bounds = array<i64: 1, 1, 18, 4>}, {pipeline_mode = #tpu.pipeline_mode<synchronous>, transform_indices = @transform_3, window_bounds = array<i64: 36, 128>}, {transform_indices = @transform_4, window_bounds = array<i64: 1, 16, 16, 128>}, {transform_indices = @transform_5, window_bounds = array<i64: 1, 1, 2, 128>}]} {
    %c0 = arith.constant 0 : index
    %c0_0 = arith.constant 0 : index
    %c0_1 = arith.constant 0 : index
    %c0_2 = arith.constant 0 : index
    %0 = vector.load %arg2[%c0, %c0_0, %c0_1, %c0_2] : memref<1x16x18x4xbf16, #tpu.memory_space<vmem>>, vector<1x16x18x4xbf16>
    %1 = vector.shape_cast %0 : vector<1x16x18x4xbf16> to vector<16x18x4xbf16>
    %c0_3 = arith.constant 0 : index
    %c0_4 = arith.constant 0 : index
    %c0_5 = arith.constant 0 : index
    %c0_6 = arith.constant 0 : index
    %2 = vector.load %arg3[%c0_3, %c0_4, %c0_5, %c0_6] : memref<1x1x18x4xbf16, #tpu.memory_space<vmem>>, vector<1x1x18x4xbf16>
    %3 = vector.shape_cast %2 : vector<1x1x18x4xbf16> to vector<1x18x4xbf16>
    %c0_7 = arith.constant 0 : index
    %c0_8 = arith.constant 0 : index
    %c0_9 = arith.constant 0 : index
    %c0_10 = arith.constant 0 : index
    %4 = vector.load %arg4[%c0_7, %c0_8, %c0_9, %c0_10] : memref<1x1x18x4xbf16, #tpu.memory_space<vmem>>, vector<1x1x18x4xbf16>
    %5 = vector.shape_cast %4 : vector<1x1x18x4xbf16> to vector<1x18x4xbf16>
    %6 = tpu.concatenate %1, %3, %5 in 0 : vector<16x18x4xbf16>, vector<1x18x4xbf16>, vector<1x18x4xbf16> -> vector<18x18x4xbf16>
    %7 = vector.extract_strided_slice %6 {offsets = [0, 0, 0], sizes = [16, 16, 4], strides = [1, 1, 1]} : vector<18x18x4xbf16> to vector<16x16x4xbf16>
    %8 = vector.extract_strided_slice %6 {offsets = [0, 1, 0], sizes = [16, 16, 4], strides = [1, 1, 1]} : vector<18x18x4xbf16> to vector<16x16x4xbf16>
    %9 = vector.extract_strided_slice %6 {offsets = [0, 2, 0], sizes = [16, 16, 4], strides = [1, 1, 1]} : vector<18x18x4xbf16> to vector<16x16x4xbf16>
    %10 = vector.extract_strided_slice %6 {offsets = [1, 0, 0], sizes = [16, 16, 4], strides = [1, 1, 1]} : vector<18x18x4xbf16> to vector<16x16x4xbf16>
    %11 = vector.extract_strided_slice %6 {offsets = [1, 1, 0], sizes = [16, 16, 4], strides = [1, 1, 1]} : vector<18x18x4xbf16> to vector<16x16x4xbf16>
    %12 = vector.extract_strided_slice %6 {offsets = [1, 2, 0], sizes = [16, 16, 4], strides = [1, 1, 1]} : vector<18x18x4xbf16> to vector<16x16x4xbf16>
    %13 = vector.extract_strided_slice %6 {offsets = [2, 0, 0], sizes = [16, 16, 4], strides = [1, 1, 1]} : vector<18x18x4xbf16> to vector<16x16x4xbf16>
    %14 = vector.extract_strided_slice %6 {offsets = [2, 1, 0], sizes = [16, 16, 4], strides = [1, 1, 1]} : vector<18x18x4xbf16> to vector<16x16x4xbf16>
    %15 = vector.extract_strided_slice %6 {offsets = [2, 2, 0], sizes = [16, 16, 4], strides = [1, 1, 1]} : vector<18x18x4xbf16> to vector<16x16x4xbf16>
    %16 = tpu.concatenate %7, %8, %9, %10, %11, %12, %13, %14, %15 in 2 : vector<16x16x4xbf16>, vector<16x16x4xbf16>, vector<16x16x4xbf16>, vector<16x16x4xbf16>, vector<16x16x4xbf16>, vector<16x16x4xbf16>, vector<16x16x4xbf16>, vector<16x16x4xbf16>, vector<16x16x4xbf16> -> vector<16x16x36xbf16>
    %17 = vector.shape_cast %16 : vector<16x16x36xbf16> to vector<256x36xbf16>
    %c0_11 = arith.constant 0 : index
    %c0_12 = arith.constant 0 : index
    %18 = vector.load %arg5[%c0_11, %c0_12] : memref<36x128xbf16, #tpu.memory_space<vmem>>, vector<36x128xbf16>
    %cst = arith.constant dense<0.000000e+00> : vector<256x128xf32>
    %19 = tpu.matmul %17, %18, %cst {dimension_numbers = #tpu.dot_dimension_numbers<[1], [0], [0], [1], [0, 0, 1, 1], [], []>} : vector<256x36xbf16>, vector<36x128xbf16>, vector<256x128xf32> -> vector<256x128xf32>
    %20 = vector.shape_cast %19 : vector<256x128xf32> to vector<1x16x16x128xf32>
    %c0_13 = arith.constant 0 : index
    %c0_14 = arith.constant 0 : index
    %c0_15 = arith.constant 0 : index
    %c0_16 = arith.constant 0 : index
    %21 = vector.load %arg6[%c0_13, %c0_14, %c0_15, %c0_16] : memref<1x16x16x128xf32, #tpu.memory_space<vmem>>, vector<1x16x16x128xf32>
    tpu.vector_store %arg6[%c0_13, %c0_14, %c0_15, %c0_16], %20 {strides = array<i32>} : memref<1x16x16x128xf32, #tpu.memory_space<vmem>>, vector<1x16x16x128xf32>,
    %cst_17 = arith.constant dense<0.000000e+00> : vector<128xf32>
    %22 = vector.multi_reduction <add>, %19, %cst_17 [0] : vector<256x128xf32> to vector<128xf32>
    %23 = vector.shape_cast %22 : vector<128xf32> to vector<1x128xf32>
    %24 = arith.mulf %19, %19 : vector<256x128xf32>
    %cst_18 = arith.constant dense<0.000000e+00> : vector<128xf32>
    %25 = vector.multi_reduction <add>, %24, %cst_18 [0] : vector<256x128xf32> to vector<128xf32>
    %26 = vector.shape_cast %25 : vector<128xf32> to vector<1x128xf32>
    %27 = tpu.concatenate %23, %26 in 0 : vector<1x128xf32>, vector<1x128xf32> -> vector<2x128xf32>
    %28 = vector.shape_cast %27 : vector<2x128xf32> to vector<1x1x2x128xf32>
    %c0_19 = arith.constant 0 : index
    %c0_20 = arith.constant 0 : index
    %c0_21 = arith.constant 0 : index
    %c0_22 = arith.constant 0 : index
    %29 = vector.load %arg7[%c0_19, %c0_20, %c0_21, %c0_22] : memref<1x1x2x128xf32, #tpu.memory_space<vmem>>, vector<1x1x2x128xf32>
    tpu.vector_store %arg7[%c0_19, %c0_20, %c0_21, %c0_22], %28 {strides = array<i32>} : memref<1x1x2x128xf32, #tpu.memory_space<vmem>>, vector<1x1x2x128xf32>,
    return
  }
  func.func @transform_0(%arg0: i32, %arg1: i32) -> (i32, i32, i32, i32) {
    %c0_i32 = arith.constant 0 : i32
    %c0_i32_0 = arith.constant 0 : i32
    %c0_i32_1 = arith.constant 0 : i32
    return %arg0, %arg1, %c0_i32, %c0_i32_0 : i32, i32, i32, i32
  }
  func.func @transform_1(%arg0: i32, %arg1: i32) -> (i32, i32, i32, i32) {
    %c16_i32 = arith.constant 16 : i32
    %0 = arith.muli %arg1, %c16_i32 : i32
    %c16_i32_0 = arith.constant 16 : i32
    %1 = arith.addi %0, %c16_i32_0 : i32
    %c0_i32 = arith.constant 0 : i32
    %2 = arith.addi %1, %c0_i32 : i32
    %c0_i32_1 = arith.constant 0 : i32
    %c0_i32_2 = arith.constant 0 : i32
    %c0_i32_3 = arith.constant 0 : i32
    return %arg0, %2, %c0_i32_1, %c0_i32_2 : i32, i32, i32, i32
  }
  func.func @transform_2(%arg0: i32, %arg1: i32) -> (i32, i32, i32, i32) {
    %c16_i32 = arith.constant 16 : i32
    %0 = arith.muli %arg1, %c16_i32 : i32
    %c16_i32_0 = arith.constant 16 : i32
    %1 = arith.addi %0, %c16_i32_0 : i32
    %c1_i32 = arith.constant 1 : i32
    %2 = arith.addi %1, %c1_i32 : i32
    %c0_i32 = arith.constant 0 : i32
    %c0_i32_1 = arith.constant 0 : i32
    %c0_i32_2 = arith.constant 0 : i32
    return %arg0, %2, %c0_i32, %c0_i32_1 : i32, i32, i32, i32
  }
  func.func @transform_3(%arg0: i32, %arg1: i32) -> (i32, i32) {
    %c0_i32 = arith.constant 0 : i32
    %c0_i32_0 = arith.constant 0 : i32
    %c0_i32_1 = arith.constant 0 : i32
    return %c0_i32, %c0_i32_0 : i32, i32
  }
  func.func @transform_4(%arg0: i32, %arg1: i32) -> (i32, i32, i32, i32) {
    %c0_i32 = arith.constant 0 : i32
    %c0_i32_0 = arith.constant 0 : i32
    %c0_i32_1 = arith.constant 0 : i32
    return %arg0, %arg1, %c0_i32, %c0_i32_0 : i32, i32, i32, i32
  }
  func.func @transform_5(%arg0: i32, %arg1: i32) -> (i32, i32, i32, i32) {
    %c0_i32 = arith.constant 0 : i32
    %c0_i32_0 = arith.constant 0 : i32
    %c0_i32_1 = arith.constant 0 : i32
    return %arg0, %arg1, %c0_i32, %c0_i32_0 : i32, i32, i32, i32
  }
}

module attributes {stable_mosaic.version = 11 : i64} {
  func.func @affine_act_kernel(%arg0: i32, %arg1: i32, %arg2: memref<1x16x16x128xf32, #tpu.memory_space<vmem>>, %arg3: memref<1x128xf32, #tpu.memory_space<vmem>>, %arg4: memref<1x128xf32, #tpu.memory_space<vmem>>, %arg5: memref<1x16x16x8xf32, #tpu.memory_space<vmem>>) attributes {dimension_semantics = [#tpu.dimension_semantics<parallel>, #tpu.dimension_semantics<parallel>], iteration_bounds = array<i64: 2, 1>, scalar_prefetch = 0 : i64, scratch_operands = 0 : i64, tpu.core_type = #tpu.core_type<tc>, window_params = [{transform_indices = @transform_0, window_bounds = array<i64: 1, 16, 16, 128>}, {pipeline_mode = #tpu.pipeline_mode<synchronous>, transform_indices = @transform_1, window_bounds = array<i64: 1, 128>}, {pipeline_mode = #tpu.pipeline_mode<synchronous>, transform_indices = @transform_2, window_bounds = array<i64: 1, 128>}, {transform_indices = @transform_3, window_bounds = array<i64: 1, 16, 16, 8>}]} {
    %c0 = arith.constant 0 : index
    %c0_0 = arith.constant 0 : index
    %c0_1 = arith.constant 0 : index
    %c0_2 = arith.constant 0 : index
    %0 = vector.load %arg2[%c0, %c0_0, %c0_1, %c0_2] : memref<1x16x16x128xf32, #tpu.memory_space<vmem>>, vector<1x16x16x128xf32>
    %c0_3 = arith.constant 0 : index
    %c0_4 = arith.constant 0 : index
    %1 = vector.load %arg3[%c0_3, %c0_4] : memref<1x128xf32, #tpu.memory_space<vmem>>, vector<1x128xf32>
    %2 = vector.shape_cast %1 : vector<1x128xf32> to vector<1x1x1x128xf32>
    %3 = vector.broadcast %2 : vector<1x1x1x128xf32> to vector<1x16x16x128xf32>
    %4 = arith.mulf %0, %3 : vector<1x16x16x128xf32>
    %c0_5 = arith.constant 0 : index
    %c0_6 = arith.constant 0 : index
    %5 = vector.load %arg4[%c0_5, %c0_6] : memref<1x128xf32, #tpu.memory_space<vmem>>, vector<1x128xf32>
    %6 = vector.shape_cast %5 : vector<1x128xf32> to vector<1x1x1x128xf32>
    %7 = vector.broadcast %6 : vector<1x1x1x128xf32> to vector<1x16x16x128xf32>
    %8 = arith.addf %4, %7 : vector<1x16x16x128xf32>
    %cst = arith.constant 0.000000e+00 : f32
    %9 = vector.broadcast %cst : f32 to vector<1x16x16x128xf32>
    %10 = arith.cmpf ogt, %8, %9 : vector<1x16x16x128xf32>
    %cst_7 = arith.constant 1.000000e-01 : f32
    %11 = vector.broadcast %cst_7 : f32 to vector<1x16x16x128xf32>
    %12 = arith.mulf %11, %8 : vector<1x16x16x128xf32>
    %13 = arith.select %10, %8, %12 : vector<1x16x16x128xi1>, vector<1x16x16x128xf32>
    %14 = vector.extract_strided_slice %13 {offsets = [0, 0, 0, 0], sizes = [1, 16, 16, 8], strides = [1, 1, 1, 1]} : vector<1x16x16x128xf32> to vector<1x16x16x8xf32>
    %c0_8 = arith.constant 0 : index
    %c0_9 = arith.constant 0 : index
    %c0_10 = arith.constant 0 : index
    %c0_11 = arith.constant 0 : index
    %15 = vector.load %arg5[%c0_8, %c0_9, %c0_10, %c0_11] : memref<1x16x16x8xf32, #tpu.memory_space<vmem>>, vector<1x16x16x8xf32>
    tpu.vector_store %arg5[%c0_8, %c0_9, %c0_10, %c0_11], %14 {strides = array<i32>} : memref<1x16x16x8xf32, #tpu.memory_space<vmem>>, vector<1x16x16x8xf32>,
    return
  }
  func.func @transform_0(%arg0: i32, %arg1: i32) -> (i32, i32, i32, i32) {
    %c0_i32 = arith.constant 0 : i32
    %c0_i32_0 = arith.constant 0 : i32
    %c0_i32_1 = arith.constant 0 : i32
    return %arg0, %arg1, %c0_i32, %c0_i32_0 : i32, i32, i32, i32
  }
  func.func @transform_1(%arg0: i32, %arg1: i32) -> (i32, i32) {
    %c0_i32 = arith.constant 0 : i32
    %c0_i32_0 = arith.constant 0 : i32
    %c0_i32_1 = arith.constant 0 : i32
    return %c0_i32, %c0_i32_0 : i32, i32
  }
  func.func @transform_2(%arg0: i32, %arg1: i32) -> (i32, i32) {
    %c0_i32 = arith.constant 0 : i32
    %c0_i32_0 = arith.constant 0 : i32
    %c0_i32_1 = arith.constant 0 : i32
    return %c0_i32, %c0_i32_0 : i32, i32
  }
  func.func @transform_3(%arg0: i32, %arg1: i32) -> (i32, i32, i32, i32) {
    %c0_i32 = arith.constant 0 : i32
    %c0_i32_0 = arith.constant 0 : i32
    %c0_i32_1 = arith.constant 0 : i32
    return %arg0, %arg1, %c0_i32, %c0_i32_0 : i32, i32, i32, i32
  }
}

</mosaic_0001>

<llo_original>
// kernel: conv2d_module.3
$region0: #{conv2d_module.3}
  #allocation0 [shape = 'u32[]', space=smem, size = 0x4, offset = 0x4, fixed_abs, tag = 'smem constant byte address 0x4 - core index']
  #allocation1 [shape = 'u32[144,128]{1,0:T(1,128)}', space=vmem, size = 0x12000, scoped, tag = 'internal scratch']
  %s0 = inlined_call_operand.vmem [shape: f32[2,16,16,128], index: 0, kind: input, shape index: {}]
  %s1 = inlined_call_operand.vmem [shape: f32[1,128], index: 1, kind: input, shape index: {}]
  %s2 = inlined_call_operand.vmem [shape: f32[1,128], index: 2, kind: input, shape index: {}]
  %s3 = inlined_call_operand.vmem [shape: f32[2,16,16,8], index: 3, kind: output, shape index: {}]
  %s4 = sld [smem:[#allocation0]]
  $region45: #{conv2d_module.3} parent=0
    _
  %s6 = ssub.s32 1, %s4
  %s7 = scalar_select 0, %s6, %s4
  loop: start=0, step=1, limit=4
  $region2: #{conv2d_module.3} parent=0 // loop_pre_header
    _
  $region3: #{conv2d_module.3} parent=0 // loop_header
    %s9 = sphi 0, %s13
    %p10 = scmp.ge.s32.totalorder %s9, 4
    %s16 = sphi 0, %s28
    %s17 = sphi 0, %s24
    %s18 = sphi 0, %s16
    %s19 = sphi 0, %s17
    %s20 = sphi 0, %s18
    %s21 = sphi 0, %s19
    %s33 = sphi 0, %s35
    %s36 = sphi 0, %s33
    %s37 = sphi 0, %s36
    %s53 = sphi 0, %s37
    %s57 = sphi 0, %s57
    %s59 = sphi 0, %s57
    %s60 = sphi 0, %s59
    %s74 = sphi 0, %s60
    %s78 = sphi 0, %s78
    %s80 = sphi 0, %s78
    %s81 = sphi 0, %s80
    %s95 = sphi 0, %s81
    %s103 = sphi 0, %s105
    %s106 = sphi 0, %s103
    %s107 = sphi 0, %s106
    %s123 = sphi 0, %s107
  $region4: #{conv2d_module.3} parent=0 // loop_header_branch
    %12 = sbr.rel (%p10) target = $region8
  $region5: #{conv2d_module.3} parent=0 // loop_body
    %s14 = ssub.s32 %s9, 1
    %s15 = ssub.s32 %s9, 2
    %s22 = sadd.s32 1, %s17
    %p23 = scmp.ge.s32.totalorder %s22, 1
    %s24 = scalar_select %p23, 0, %s22
    %s25 = sadd.s32 1, %s16
    %s26 = scalar_select %p23, %s25, %s16
    %p27 = scmp.ge.s32.totalorder %s26, 2
    %s28 = scalar_select %p27, 0, %s26
    %s29 = ssub.s32 %s16, %s28
    %s30 = ssub.s32 %s17, %s24
    %s31 = sor.u32 %s29, %s30
    %p32 = scmp.eq.s32.totalorder %s31, 0
    %s34 = sadd.s32 %s33, 1
    %s35 = scalar_select %p32, %s33, %s34
    %p38 = pneg %p32
    %p39 = scmp.eq.s32.totalorder %s9, 1
    %p40 = por %p38, %p39
    %p41 = scmp.ne.s32.totalorder %s33, %s36
    %p42 = scmp.eq.s32.totalorder %s9, 0
    %p43 = por %p41, %p42
    %p44 = scmp.ne.s32.totalorder %s33, %s36
    %p45 = scmp.eq.s32.totalorder %s14, 1
    %p46 = por %p44, %p45
    %p47 = scmp.ne.s32.totalorder %s36, %s37
    %p48 = scmp.eq.s32.totalorder %s14, 0
    %p49 = por %p47, %p48
    %p50 = scmp.ne.s32.totalorder %s36, %s37
    %p51 = scmp.eq.s32.totalorder %s15, 1
    %p52 = por %p50, %p51
    %p54 = scmp.ne.s32.totalorder %s37, %s53
    %p55 = scmp.eq.s32.totalorder %s15, 0
    %p56 = por %p54, %p55
    %s58 = sadd.s32 %s57, 1
    %p61 = scmp.eq.s32.totalorder %s9, 1
    %p62 = scmp.ne.s32.totalorder %s57, %s59
    %p63 = scmp.eq.s32.totalorder %s9, 0
    %p64 = por %p62, %p63
    %p65 = scmp.ne.s32.totalorder %s57, %s59
    %p66 = scmp.eq.s32.totalorder %s14, 1
    %p67 = por %p65, %p66
    %p68 = scmp.ne.s32.totalorder %s59, %s60
    %p69 = scmp.eq.s32.totalorder %s14, 0
    %p70 = por %p68, %p69
    %p71 = scmp.ne.s32.totalorder %s59, %s60
    %p72 = scmp.eq.s32.totalorder %s15, 1
    %p73 = por %p71, %p72
    %p75 = scmp.ne.s32.totalorder %s60, %s74
    %p76 = scmp.eq.s32.totalorder %s15, 0
    %p77 = por %p75, %p76
    %s79 = sadd.s32 %s78, 1
    %p82 = scmp.eq.s32.totalorder %s9, 1
    %p83 = scmp.ne.s32.totalorder %s78, %s80
    %p84 = scmp.eq.s32.totalorder %s9, 0
    %p85 = por %p83, %p84
    %p86 = scmp.ne.s32.totalorder %s78, %s80
    %p87 = scmp.eq.s32.totalorder %s14, 1
    %p88 = por %p86, %p87
    %p89 = scmp.ne.s32.totalorder %s80, %s81
    %p90 = scmp.eq.s32.totalorder %s14, 0
    %p91 = por %p89, %p90
    %p92 = scmp.ne.s32.totalorder %s80, %s81
    %p93 = scmp.eq.s32.totalorder %s15, 1
    %p94 = por %p92, %p93
    %p96 = scmp.ne.s32.totalorder %s81, %s95
    %p97 = scmp.eq.s32.totalorder %s15, 0
    %p98 = por %p96, %p97
    %s99 = ssub.s32 %s16, %s28
    %s100 = ssub.s32 %s17, %s24
    %s101 = sor.u32 %s99, %s100
    %p102 = scmp.eq.s32.totalorder %s101, 0
    %s104 = sadd.s32 %s103, 1
    %s105 = scalar_select %p102, %s103, %s104
    %p108 = pneg %p102
    %p109 = scmp.eq.s32.totalorder %s9, 1
    %p110 = por %p108, %p109
    %p111 = scmp.ne.s32.totalorder %s103, %s106
    %p112 = scmp.eq.s32.totalorder %s9, 0
    %p113 = por %p111, %p112
    %p114 = scmp.ne.s32.totalorder %s103, %s106
    %p115 = scmp.eq.s32.totalorder %s14, 1
    %p116 = por %p114, %p115
    %p117 = scmp.ne.s32.totalorder %s106, %s107
    %p118 = scmp.eq.s32.totalorder %s14, 0
    %p119 = por %p117, %p118
    %p120 = scmp.ne.s32.totalorder %s106, %s107
    %p121 = scmp.eq.s32.totalorder %s15, 1
    %p122 = por %p120, %p121
    %p124 = scmp.ne.s32.totalorder %s107, %s123
    %p125 = scmp.eq.s32.totalorder %s15, 0
    %p126 = por %p124, %p125
    %p127 = scmp.le.s32.totalorder 1, %s9
    %p128 = scmp.lt.s32.totalorder %s9, 3
    %p129 = pnand %p127, %p128
    %p130 = pneg %p129
    // Predicated region
    $region9: #{conv2d_module.3} parent=5 // pred_check
      _
    $region10: #{conv2d_module.3} parent=5 // pred_check_branch
      %132 = sbr.rel (%p129) target = $region12
    $region11: #{conv2d_module.3} parent=5 // pred_region
      %s133 = ssub.s32 %s9, 1
      // Predicated region
      $region13: #{conv2d_module.3} parent=11 // pred_check
        %p134 = pneg %p70
      $region14: #{conv2d_module.3} parent=11 // pred_check_branch
        %136 = sbr.rel (%p134) target = $region16
      $region15: #{conv2d_module.3} parent=11 // pred_region
        _
      $region16: #{conv2d_module.3} parent=11 // pred_fallthru
        _
      // Predicated region
      $region17: #{conv2d_module.3} parent=11 // pred_check
        %p137 = pneg %p91
      $region18: #{conv2d_module.3} parent=11 // pred_check_branch
        %139 = sbr.rel (%p137) target = $region20
      $region19: #{conv2d_module.3} parent=11 // pred_region
        _
      $region20: #{conv2d_module.3} parent=11 // pred_fallthru
        _
    $region12: #{conv2d_module.3} parent=5 // pred_fallthru
      _
    %p140 = scmp.lt.s32.totalorder %s9, 2
    // Predicated region
    $region21: #{conv2d_module.3} parent=5 // pred_check
      %p141 = pneg %p140
    $region22: #{conv2d_module.3} parent=5 // pred_check_branch
      %143 = sbr.rel (%p141) target = $region24
    $region23: #{conv2d_module.3} parent=5 // pred_region
      // Predicated region
      $region25: #{conv2d_module.3} parent=23 // pred_check
        %p144 = pneg %p43
      $region26: #{conv2d_module.3} parent=23 // pred_check_branch
        %146 = sbr.rel (%p144) target = $region28
      $region27: #{conv2d_module.3} parent=23 // pred_region
        %s147 = smul.u32 16, %s17
        %p148 = scmp.lt.s32.totalorder %s16, 1
        %s149 = scalar_select %p148, %s16, 1
        %p150 = scmp.lt.s32.totalorder %s147, 15
        %s151 = scalar_select %p150, %s147, 15
        %s152 = smul.addr %s151, 2
        %s153 = smul.addr %s149, 32
        %s154 = sadd.s32 %s152, %s153
        %s155 = smul.addr %s154, 8
        %s156 = scalar_lea.vmem %s0, %s155
        %s157 = smul.u32 16, %s17
      $region28: #{conv2d_module.3} parent=23 // pred_fallthru
        _
    $region24: #{conv2d_module.3} parent=5 // pred_fallthru
      _
    %p158 = scmp.le.s32.totalorder 1, %s9
    %p159 = scmp.lt.s32.totalorder %s9, 3
    %p160 = pnand %p158, %p159
    %p161 = pneg %p160
    // Predicated region
    $region29: #{conv2d_module.3} parent=5 // pred_check
      _
    $region30: #{conv2d_module.3} parent=5 // pred_check_branch
      %163 = sbr.rel (%p160) target = $region32
    $region31: #{conv2d_module.3} parent=5 // pred_region
      %s164 = ssub.s32 %s9, 1
      %s165 = smul.u32 16, %s19
      %p166 = scmp.lt.s32.totalorder %s18, 1
      %s167 = scalar_select %p166, %s18, 1
      %p168 = scmp.lt.s32.totalorder %s165, 15
      %s169 = scalar_select %p168, %s165, 15
      %s170 = smul.addr %s169, 2
      %s171 = smul.addr %s167, 32
      %s172 = sadd.s32 %s170, %s171
      %s173 = smul.addr %s172, 8
      %s174 = scalar_lea.vmem %s0, %s173
      %p175 = pneg %p49
      %p176 = pneg %p46
      %p177 = pneg %p70
      %p178 = pneg %p67
      %p179 = pneg %p91
      %p180 = pneg %p88
      %p181 = pneg %p119
      %p182 = pneg %p116
      %s183 = smul.u32 16, %s19
      %p184 = scmp.lt.s32.totalorder %s18, 1
      %s185 = scalar_select %p184, %s18, 1
      %p186 = scmp.lt.s32.totalorder %s183, 15
      %s187 = scalar_select %p186, %s183, 15
      %s188 = smul.addr %s187, 2
      %s189 = smul.addr %s185, 32
      %s190 = sadd.s32 %s188, %s189
      %s191 = smul.addr %s190, 8
      %s192 = scalar_lea.vmem %s3, %s191
      %s193 = smul.u32 16, %s19
      %p194 = scmp.lt.s32.totalorder %s18, 1
      %s195 = scalar_select %p194, %s18, 1
      %p196 = scmp.lt.s32.totalorder %s193, 15
      %s197 = scalar_select %p196, %s193, 15
      %s198 = smul.addr %s197, 2
      %s199 = smul.addr %s195, 32
      %s200 = sadd.s32 %s198, %s199
      %s201 = smul.addr %s200, 8
      %s202 = scalar_lea.vmem %s0, %s201
      %s203 = smul.u32 16, %s19
      %s204 = smul.u32 16, %s19
      %p205 = scmp.lt.s32.totalorder %s18, 1
      %s206 = scalar_select %p205, %s18, 1
      %p207 = scmp.lt.s32.totalorder %s204, 15
      %s208 = scalar_select %p207, %s204, 15
      %s209 = smul.addr %s208, 2
      %s210 = smul.addr %s206, 32
      %s211 = sadd.s32 %s209, %s210
      %s212 = smul.addr %s211, 8
      %s213 = scalar_lea.vmem %s3, %s212
      %s214 = smul.u32 16, %s19
      %v215 = vld [vmem:[%s202] sm:$0xff]
      %v216 = vld [vmem:[%s202 + $0x8] sm:$0xff]
      %v217 = vld [vmem:[%s202 + $0x10] sm:$0xff]
      %v218 = vld [vmem:[%s202 + $0x18] sm:$0xff]
      %v219 = vld [vmem:[%s202 + $0x20] sm:$0xff]
      %v220 = vld [vmem:[%s202 + $0x28] sm:$0xff]
      %v221 = vld [vmem:[%s202 + $0x30] sm:$0xff]
      %v222 = vld [vmem:[%s202 + $0x38] sm:$0xff]
      %v223 = vld [vmem:[%s202 + $0x40] sm:$0xff]
      %v224 = vld [vmem:[%s202 + $0x48] sm:$0xff]
      %v225 = vld [vmem:[%s202 + $0x50] sm:$0xff]
      %v226 = vld [vmem:[%s202 + $0x58] sm:$0xff]
      %v227 = vld [vmem:[%s202 + $0x60] sm:$0xff]
      %v228 = vld [vmem:[%s202 + $0x68] sm:$0xff]
      %v229 = vld [vmem:[%s202 + $0x70] sm:$0xff]
      %v230 = vld [vmem:[%s202 + $0x78] sm:$0xff]
      %v231 = vld [vmem:[%s202 + $0x80] sm:$0xff]
      %v232 = vld [vmem:[%s202 + $0x88] sm:$0xff]
      %v233 = vld [vmem:[%s202 + $0x90] sm:$0xff]
      %v234 = vld [vmem:[%s202 + $0x98] sm:$0xff]
      %v235 = vld [vmem:[%s202 + $0xa0] sm:$0xff]
      %v236 = vld [vmem:[%s202 + $0xa8] sm:$0xff]
      %v237 = vld [vmem:[%s202 + $0xb0] sm:$0xff]
      %v238 = vld [vmem:[%s202 + $0xb8] sm:$0xff]
      %v239 = vld [vmem:[%s202 + $0xc0] sm:$0xff]
      %v240 = vld [vmem:[%s202 + $0xc8] sm:$0xff]
      %v241 = vld [vmem:[%s202 + $0xd0] sm:$0xff]
      %v242 = vld [vmem:[%s202 + $0xd8] sm:$0xff]
      %v243 = vld [vmem:[%s202 + $0xe0] sm:$0xff]
      %v244 = vld [vmem:[%s202 + $0xe8] sm:$0xff]
      %v245 = vld [vmem:[%s202 + $0xf0] sm:$0xff]
      %v246 = vld [vmem:[%s202 + $0xf8] sm:$0xff]
      %v247 = vld [vmem:[%s1] sm:$0x1]
      %v249 = vlaneseq
      %v250 = vshrl.u32 %v249, 7
      %v251 = vsub.s32 0, %v250
      %v252 = vrot.slane %v247, %v251
      %v254 = vmul.f32 %v215, %v252
      %v255 = vmul.f32 %v216, %v252
      %v256 = vmul.f32 %v217, %v252
      %v257 = vmul.f32 %v218, %v252
      %v258 = vmul.f32 %v219, %v252
      %v259 = vmul.f32 %v220, %v252
      %v260 = vmul.f32 %v221, %v252
      %v261 = vmul.f32 %v222, %v252
      %v262 = vmul.f32 %v223, %v252
      %v263 = vmul.f32 %v224, %v252
      %v264 = vmul.f32 %v225, %v252
      %v265 = vmul.f32 %v226, %v252
      %v266 = vmul.f32 %v227, %v252
      %v267 = vmul.f32 %v228, %v252
      %v268 = vmul.f32 %v229, %v252
      %v269 = vmul.f32 %v230, %v252
      %v270 = vmul.f32 %v231, %v252
      %v271 = vmul.f32 %v232, %v252
      %v272 = vmul.f32 %v233, %v252
      %v273 = vmul.f32 %v234, %v252
      %v274 = vmul.f32 %v235, %v252
      %v275 = vmul.f32 %v236, %v252
      %v276 = vmul.f32 %v237, %v252
      %v277 = vmul.f32 %v238, %v252
      %v278 = vmul.f32 %v239, %v252
      %v279 = vmul.f32 %v240, %v252
      %v280 = vmul.f32 %v241, %v252
      %v281 = vmul.f32 %v242, %v252
      %v282 = vmul.f32 %v243, %v252
      %v283 = vmul.f32 %v244, %v252
      %v284 = vmul.f32 %v245, %v252
      %v285 = vmul.f32 %v246, %v252
      %v286 = vld [vmem:[%s2] sm:$0x1]
      %v288 = vlaneseq
      %v289 = vshrl.u32 %v288, 7
      %v290 = vsub.s32 0, %v289
      %v291 = vrot.slane %v286, %v290
      %v293 = vadd.f32 %v254, %v291
      %v294 = vadd.f32 %v255, %v291
      %v295 = vadd.f32 %v256, %v291
      %v296 = vadd.f32 %v257, %v291
      %v297 = vadd.f32 %v258, %v291
      %v298 = vadd.f32 %v259, %v291
      %v299 = vadd.f32 %v260, %v291
      %v300 = vadd.f32 %v261, %v291
      %v301 = vadd.f32 %v262, %v291
      %v302 = vadd.f32 %v263, %v291
      %v303 = vadd.f32 %v264, %v291
      %v304 = vadd.f32 %v265, %v291
      %v305 = vadd.f32 %v266, %v291
      %v306 = vadd.f32 %v267, %v291
      %v307 = vadd.f32 %v268, %v291
      %v308 = vadd.f32 %v269, %v291
      %v309 = vadd.f32 %v270, %v291
      %v310 = vadd.f32 %v271, %v291
      %v311 = vadd.f32 %v272, %v291
      %v312 = vadd.f32 %v273, %v291
      %v313 = vadd.f32 %v274, %v291
      %v314 = vadd.f32 %v275, %v291
      %v315 = vadd.f32 %v276, %v291
      %v316 = vadd.f32 %v277, %v291
      %v317 = vadd.f32 %v278, %v291
      %v318 = vadd.f32 %v279, %v291
      %v319 = vadd.f32 %v280, %v291
      %v320 = vadd.f32 %v281, %v291
      %v321 = vadd.f32 %v282, %v291
      %v322 = vadd.f32 %v283, %v291
      %v323 = vadd.f32 %v284, %v291
      %v324 = vadd.f32 %v285, %v291
      %vm325 = vcmp.gt.f32.partialorder %v293, 0.0
      %vm326 = vcmp.gt.f32.partialorder %v294, 0.0
      %vm327 = vcmp.gt.f32.partialorder %v295, 0.0
      %vm328 = vcmp.gt.f32.partialorder %v296, 0.0
      %vm329 = vcmp.gt.f32.partialorder %v297, 0.0
      %vm330 = vcmp.gt.f32.partialorder %v298, 0.0
      %vm331 = vcmp.gt.f32.partialorder %v299, 0.0
      %vm332 = vcmp.gt.f32.partialorder %v300, 0.0
      %vm333 = vcmp.gt.f32.partialorder %v301, 0.0
      %vm334 = vcmp.gt.f32.partialorder %v302, 0.0
      %vm335 = vcmp.gt.f32.partialorder %v303, 0.0
      %vm336 = vcmp.gt.f32.partialorder %v304, 0.0
      %vm337 = vcmp.gt.f32.partialorder %v305, 0.0
      %vm338 = vcmp.gt.f32.partialorder %v306, 0.0
      %vm339 = vcmp.gt.f32.partialorder %v307, 0.0
      %vm340 = vcmp.gt.f32.partialorder %v308, 0.0
      %vm341 = vcmp.gt.f32.partialorder %v309, 0.0
      %vm342 = vcmp.gt.f32.partialorder %v310, 0.0
      %vm343 = vcmp.gt.f32.partialorder %v311, 0.0
      %vm344 = vcmp.gt.f32.partialorder %v312, 0.0
      %vm345 = vcmp.gt.f32.partialorder %v313, 0.0
      %vm346 = vcmp.gt.f32.partialorder %v314, 0.0
      %vm347 = vcmp.gt.f32.partialorder %v315, 0.0
      %vm348 = vcmp.gt.f32.partialorder %v316, 0.0
      %vm349 = vcmp.gt.f32.partialorder %v317, 0.0
      %vm350 = vcmp.gt.f32.partialorder %v318, 0.0
      %vm351 = vcmp.gt.f32.partialorder %v319, 0.0
      %vm352 = vcmp.gt.f32.partialorder %v320, 0.0
      %vm353 = vcmp.gt.f32.partialorder %v321, 0.0
      %vm354 = vcmp.gt.f32.partialorder %v322, 0.0
      %vm355 = vcmp.gt.f32.partialorder %v323, 0.0
      %vm356 = vcmp.gt.f32.partialorder %v324, 0.0
      %v357 = vmul.f32 %v293, 0.1
      %v358 = vmul.f32 %v294, 0.1
      %v359 = vmul.f32 %v295, 0.1
      %v360 = vmul.f32 %v296, 0.1
      %v361 = vmul.f32 %v297, 0.1
      %v362 = vmul.f32 %v298, 0.1
      %v363 = vmul.f32 %v299, 0.1
      %v364 = vmul.f32 %v300, 0.1
      %v365 = vmul.f32 %v301, 0.1
      %v366 = vmul.f32 %v302, 0.1
      %v367 = vmul.f32 %v303, 0.1
      %v368 = vmul.f32 %v304, 0.1
      %v369 = vmul.f32 %v305, 0.1
      %v370 = vmul.f32 %v306, 0.1
      %v371 = vmul.f32 %v307, 0.1
      %v372 = vmul.f32 %v308, 0.1
      %v373 = vmul.f32 %v309, 0.1
      %v374 = vmul.f32 %v310, 0.1
      %v375 = vmul.f32 %v311, 0.1
      %v376 = vmul.f32 %v312, 0.1
      %v377 = vmul.f32 %v313, 0.1
      %v378 = vmul.f32 %v314, 0.1
      %v379 = vmul.f32 %v315, 0.1
      %v380 = vmul.f32 %v316, 0.1
      %v381 = vmul.f32 %v317, 0.1
      %v382 = vmul.f32 %v318, 0.1
      %v383 = vmul.f32 %v319, 0.1
      %v384 = vmul.f32 %v320, 0.1
      %v385 = vmul.f32 %v321, 0.1
      %v386 = vmul.f32 %v322, 0.1
      %v387 = vmul.f32 %v323, 0.1
      %v388 = vmul.f32 %v324, 0.1
      %v389 = vsel %vm325, %v293, %v357
      %v390 = vsel %vm326, %v294, %v358
      %v391 = vsel %vm327, %v295, %v359
      %v392 = vsel %vm328, %v296, %v360
      %v393 = vsel %vm329, %v297, %v361
      %v394 = vsel %vm330, %v298, %v362
      %v395 = vsel %vm331, %v299, %v363
      %v396 = vsel %vm332, %v300, %v364
      %v397 = vsel %vm333, %v301, %v365
      %v398 = vsel %vm334, %v302, %v366
      %v399 = vsel %vm335, %v303, %v367
      %v400 = vsel %vm336, %v304, %v368
      %v401 = vsel %vm337, %v305, %v369
      %v402 = vsel %vm338, %v306, %v370
      %v403 = vsel %vm339, %v307, %v371
      %v404 = vsel %vm340, %v308, %v372
      %v405 = vsel %vm341, %v309, %v373
      %v406 = vsel %vm342, %v310, %v374
      %v407 = vsel %vm343, %v311, %v375
      %v408 = vsel %vm344, %v312, %v376
      %v409 = vsel %vm345, %v313, %v377
      %v410 = vsel %vm346, %v314, %v378
      %v411 = vsel %vm347, %v315, %v379
      %v412 = vsel %vm348, %v316, %v380
      %v413 = vsel %vm349, %v317, %v381
      %v414 = vsel %vm350, %v318, %v382
      %v415 = vsel %vm351, %v319, %v383
      %v416 = vsel %vm352, %v320, %v384
      %v417 = vsel %vm353, %v321, %v385
      %v418 = vsel %vm354, %v322, %v386
      %v419 = vsel %vm355, %v323, %v387
      %v420 = vsel %vm356, %v324, %v388
      %vm421 = vcmask 64512
      %422 = vst.msk [vmem:[%s213] sm:$0xff] %vm421, %v389
      %423 = vst.msk [vmem:[%s213 + $0x8] sm:$0xff] %vm421, %v390
      %424 = vst.msk [vmem:[%s213 + $0x10] sm:$0xff] %vm421, %v391
      %425 = vst.msk [vmem:[%s213 + $0x18] sm:$0xff] %vm421, %v392
      %426 = vst.msk [vmem:[%s213 + $0x20] sm:$0xff] %vm421, %v393
      %427 = vst.msk [vmem:[%s213 + $0x28] sm:$0xff] %vm421, %v394
      %428 = vst.msk [vmem:[%s213 + $0x30] sm:$0xff] %vm421, %v395
      %429 = vst.msk [vmem:[%s213 + $0x38] sm:$0xff] %vm421, %v396
      %430 = vst.msk [vmem:[%s213 + $0x40] sm:$0xff] %vm421, %v397
      %431 = vst.msk [vmem:[%s213 + $0x48] sm:$0xff] %vm421, %v398
      %432 = vst.msk [vmem:[%s213 + $0x50] sm:$0xff] %vm421, %v399
      %433 = vst.msk [vmem:[%s213 + $0x58] sm:$0xff] %vm421, %v400
      %434 = vst.msk [vmem:[%s213 + $0x60] sm:$0xff] %vm421, %v401
      %435 = vst.msk [vmem:[%s213 + $0x68] sm:$0xff] %vm421, %v402
      %436 = vst.msk [vmem:[%s213 + $0x70] sm:$0xff] %vm421, %v403
      %437 = vst.msk [vmem:[%s213 + $0x78] sm:$0xff] %vm421, %v404
      %438 = vst.msk [vmem:[%s213 + $0x80] sm:$0xff] %vm421, %v405
      %439 = vst.msk [vmem:[%s213 + $0x88] sm:$0xff] %vm421, %v406
      %440 = vst.msk [vmem:[%s213 + $0x90] sm:$0xff] %vm421, %v407
      %441 = vst.msk [vmem:[%s213 + $0x98] sm:$0xff] %vm421, %v408
      %442 = vst.msk [vmem:[%s213 + $0xa0] sm:$0xff] %vm421, %v409
      %443 = vst.msk [vmem:[%s213 + $0xa8] sm:$0xff] %vm421, %v410
      %444 = vst.msk [vmem:[%s213 + $0xb0] sm:$0xff] %vm421, %v411
      %445 = vst.msk [vmem:[%s213 + $0xb8] sm:$0xff] %vm421, %v412
      %446 = vst.msk [vmem:[%s213 + $0xc0] sm:$0xff] %vm421, %v413
      %447 = vst.msk [vmem:[%s213 + $0xc8] sm:$0xff] %vm421, %v414
      %448 = vst.msk [vmem:[%s213 + $0xd0] sm:$0xff] %vm421, %v415
      %449 = vst.msk [vmem:[%s213 + $0xd8] sm:$0xff] %vm421, %v416
      %450 = vst.msk [vmem:[%s213 + $0xe0] sm:$0xff] %vm421, %v417
      %451 = vst.msk [vmem:[%s213 + $0xe8] sm:$0xff] %vm421, %v418
      %452 = vst.msk [vmem:[%s213 + $0xf0] sm:$0xff] %vm421, %v419
      %453 = vst.msk [vmem:[%s213 + $0xf8] sm:$0xff] %vm421, %v420
      %s454 = smul.u32 16, %s19
      %p455 = scmp.lt.s32.totalorder %s18, 1
      %s456 = scalar_select %p455, %s18, 1
      %p457 = scmp.lt.s32.totalorder %s454, 15
      %s458 = scalar_select %p457, %s454, 15
      %s459 = smul.addr %s458, 2
      %s460 = smul.addr %s456, 32
      %s461 = sadd.s32 %s459, %s460
      %s462 = smul.addr %s461, 8
      %s463 = scalar_lea.vmem %s3, %s462
      // Predicated region
      $region33: #{conv2d_module.3} parent=31 // pred_check
        %p464 = pneg %p116
      $region34: #{conv2d_module.3} parent=31 // pred_check_branch
        %466 = sbr.rel (%p464) target = $region36
      $region35: #{conv2d_module.3} parent=31 // pred_region
        %s467 = smul.u32 16, %s19
      $region36: #{conv2d_module.3} parent=31 // pred_fallthru
        _
    $region32: #{conv2d_module.3} parent=5 // pred_fallthru
      _
    %p468 = scmp.le.s32.totalorder 2, %s9
    // Predicated region
    $region37: #{conv2d_module.3} parent=5 // pred_check
      %p469 = pneg %p468
    $region38: #{conv2d_module.3} parent=5 // pred_check_branch
      %471 = sbr.rel (%p469) target = $region40
    $region39: #{conv2d_module.3} parent=5 // pred_region
      %s472 = ssub.s32 %s9, 2
      // Predicated region
      $region41: #{conv2d_module.3} parent=39 // pred_check
        %p473 = pneg %p122
      $region42: #{conv2d_module.3} parent=39 // pred_check_branch
        %475 = sbr.rel (%p473) target = $region44
      $region43: #{conv2d_module.3} parent=39 // pred_region
        %s476 = smul.u32 16, %s21
        %p477 = scmp.lt.s32.totalorder %s20, 1
        %s478 = scalar_select %p477, %s20, 1
        %p479 = scmp.lt.s32.totalorder %s476, 15
        %s480 = scalar_select %p479, %s476, 15
        %s481 = smul.addr %s480, 2
        %s482 = smul.addr %s478, 32
        %s483 = sadd.s32 %s481, %s482
        %s484 = smul.addr %s483, 8
        %s485 = scalar_lea.vmem %s3, %s484
      $region44: #{conv2d_module.3} parent=39 // pred_fallthru
        _
    $region40: #{conv2d_module.3} parent=5 // pred_fallthru
      _
  $region6: #{conv2d_module.3} parent=0 // loop_footer
    %s13 = sadd.s32 1, %s9
  $region7: #{conv2d_module.3} parent=0 // loop_footer_branch
    %8 = sbr.rel target = $region3
  $region8: #{conv2d_module.3} parent=0 // loop_exit
    _

// kernel: conv2d_module.2
$region0: #{conv2d_module.2}
  #allocation0 [shape = 'u32[]', space=smem, size = 0x4, offset = 0x4, fixed_abs, tag = 'smem constant byte address 0x4 - core index']
  #allocation1 [shape = 'u32[144,128]{1,0:T(1,128)}', space=vmem, size = 0x12000, scoped, tag = 'internal scratch']
  %s0 = inlined_call_operand.vmem [shape: bf16[2,18,18,4], index: 0, kind: input, shape index: {}, may-alias: {0,1,2}]
  %s1 = inlined_call_operand.vmem [shape: bf16[2,18,18,4], index: 1, kind: input, shape index: {}, may-alias: {0,1,2}]
  %s2 = inlined_call_operand.vmem [shape: bf16[2,18,18,4], index: 2, kind: input, shape index: {}, may-alias: {0,1,2}]
  %s3 = inlined_call_operand.vmem [shape: bf16[36,128], index: 3, kind: input, shape index: {}]
  %s4 = inlined_call_operand.vmem [shape: f32[2,16,16,128], index: 4, kind: output, shape index: {0}]
  %s5 = inlined_call_operand.vmem [shape: f32[2,1,2,128], index: 5, kind: output, shape index: {1}]
  %6 = xla_tuple %s4, %s5
  %s7 = sld [smem:[#allocation0]]
  $region57: #{conv2d_module.2} parent=0
    _
  %s9 = ssub.s32 1, %s7
  %s10 = scalar_select 0, %s9, %s7
  loop: start=0, step=1, limit=4
  $region2: #{conv2d_module.2} parent=0 // loop_pre_header
    _
  $region3: #{conv2d_module.2} parent=0 // loop_header
    %s12 = sphi 0, %s16
    %p13 = scmp.ge.s32.totalorder %s12, 4
    %s19 = sphi 0, %s31
    %s20 = sphi 0, %s27
    %s21 = sphi 0, %s19
    %s22 = sphi 0, %s20
    %s23 = sphi 0, %s21
    %s24 = sphi 0, %s22
    %s36 = sphi 0, %s38
    %s39 = sphi 0, %s36
    %s40 = sphi 0, %s39
    %s56 = sphi 0, %s40
    %s68 = sphi 0, %s70
    %s71 = sphi 0, %s68
    %s72 = sphi 0, %s71
    %s88 = sphi 0, %s72
    %s100 = sphi 0, %s102
    %s103 = sphi 0, %s100
    %s104 = sphi 0, %s103
    %s120 = sphi 0, %s104
    %s124 = sphi 0, %s124
    %s126 = sphi 0, %s124
    %s127 = sphi 0, %s126
    %s141 = sphi 0, %s127
    %s149 = sphi 0, %s151
    %s152 = sphi 0, %s149
    %s153 = sphi 0, %s152
    %s169 = sphi 0, %s153
    %s177 = sphi 0, %s179
    %s180 = sphi 0, %s177
    %s181 = sphi 0, %s180
    %s197 = sphi 0, %s181
  $region4: #{conv2d_module.2} parent=0 // loop_header_branch
    %15 = sbr.rel (%p13) target = $region8
  $region5: #{conv2d_module.2} parent=0 // loop_body
    %s17 = ssub.s32 %s12, 1
    %s18 = ssub.s32 %s12, 2
    %s25 = sadd.s32 1, %s20
    %p26 = scmp.ge.s32.totalorder %s25, 1
    %s27 = scalar_select %p26, 0, %s25
    %s28 = sadd.s32 1, %s19
    %s29 = scalar_select %p26, %s28, %s19
    %p30 = scmp.ge.s32.totalorder %s29, 2
    %s31 = scalar_select %p30, 0, %s29
    %s32 = ssub.s32 %s19, %s31
    %s33 = ssub.s32 %s20, %s27
    %s34 = sor.u32 %s32, %s33
    %p35 = scmp.eq.s32.totalorder %s34, 0
    %s37 = sadd.s32 %s36, 1
    %s38 = scalar_select %p35, %s36, %s37
    %p41 = pneg %p35
    %p42 = scmp.eq.s32.totalorder %s12, 1
    %p43 = por %p41, %p42
    %p44 = scmp.ne.s32.totalorder %s36, %s39
    %p45 = scmp.eq.s32.totalorder %s12, 0
    %p46 = por %p44, %p45
    %p47 = scmp.ne.s32.totalorder %s36, %s39
    %p48 = scmp.eq.s32.totalorder %s17, 1
    %p49 = por %p47, %p48
    %p50 = scmp.ne.s32.totalorder %s39, %s40
    %p51 = scmp.eq.s32.totalorder %s17, 0
    %p52 = por %p50, %p51
    %p53 = scmp.ne.s32.totalorder %s39, %s40
    %p54 = scmp.eq.s32.totalorder %s18, 1
    %p55 = por %p53, %p54
    %p57 = scmp.ne.s32.totalorder %s40, %s56
    %p58 = scmp.eq.s32.totalorder %s18, 0
    %p59 = por %p57, %p58
    %s60 = smul.u32 %s20, 16
    %s61 = sadd.s32 %s60, 16
    %s62 = smul.u32 %s27, 16
    %s63 = sadd.s32 %s62, 16
    %s64 = ssub.s32 %s19, %s31
    %s65 = ssub.s32 %s61, %s63
    %s66 = sor.u32 %s64, %s65
    %p67 = scmp.eq.s32.totalorder %s66, 0
    %s69 = sadd.s32 %s68, 1
    %s70 = scalar_select %p67, %s68, %s69
    %p73 = pneg %p67
    %p74 = scmp.eq.s32.totalorder %s12, 1
    %p75 = por %p73, %p74
    %p76 = scmp.ne.s32.totalorder %s68, %s71
    %p77 = scmp.eq.s32.totalorder %s12, 0
    %p78 = por %p76, %p77
    %p79 = scmp.ne.s32.totalorder %s68, %s71
    %p80 = scmp.eq.s32.totalorder %s17, 1
    %p81 = por %p79, %p80
    %p82 = scmp.ne.s32.totalorder %s71, %s72
    %p83 = scmp.eq.s32.totalorder %s17, 0
    %p84 = por %p82, %p83
    %p85 = scmp.ne.s32.totalorder %s71, %s72
    %p86 = scmp.eq.s32.totalorder %s18, 1
    %p87 = por %p85, %p86
    %p89 = scmp.ne.s32.totalorder %s72, %s88
    %p90 = scmp.eq.s32.totalorder %s18, 0
    %p91 = por %p89, %p90
    %s92 = smul.u32 %s20, 16
    %s93 = sadd.s32 %s92, 17
    %s94 = smul.u32 %s27, 16
    %s95 = sadd.s32 %s94, 17
    %s96 = ssub.s32 %s19, %s31
    %s97 = ssub.s32 %s93, %s95
    %s98 = sor.u32 %s96, %s97
    %p99 = scmp.eq.s32.totalorder %s98, 0
    %s101 = sadd.s32 %s100, 1
    %s102 = scalar_select %p99, %s100, %s101
    %p105 = pneg %p99
    %p106 = scmp.eq.s32.totalorder %s12, 1
    %p107 = por %p105, %p106
    %p108 = scmp.ne.s32.totalorder %s100, %s103
    %p109 = scmp.eq.s32.totalorder %s12, 0
    %p110 = por %p108, %p109
    %p111 = scmp.ne.s32.totalorder %s100, %s103
    %p112 = scmp.eq.s32.totalorder %s17, 1
    %p113 = por %p111, %p112
    %p114 = scmp.ne.s32.totalorder %s103, %s104
    %p115 = scmp.eq.s32.totalorder %s17, 0
    %p116 = por %p114, %p115
    %p117 = scmp.ne.s32.totalorder %s103, %s104
    %p118 = scmp.eq.s32.totalorder %s18, 1
    %p119 = por %p117, %p118
    %p121 = scmp.ne.s32.totalorder %s104, %s120
    %p122 = scmp.eq.s32.totalorder %s18, 0
    %p123 = por %p121, %p122
    %s125 = sadd.s32 %s124, 1
    %p128 = scmp.eq.s32.totalorder %s12, 1
    %p129 = scmp.ne.s32.totalorder %s124, %s126
    %p130 = scmp.eq.s32.totalorder %s12, 0
    %p131 = por %p129, %p130
    %p132 = scmp.ne.s32.totalorder %s124, %s126
    %p133 = scmp.eq.s32.totalorder %s17, 1
    %p134 = por %p132, %p133
    %p135 = scmp.ne.s32.totalorder %s126, %s127
    %p136 = scmp.eq.s32.totalorder %s17, 0
    %p137 = por %p135, %p136
    %p138 = scmp.ne.s32.totalorder %s126, %s127
    %p139 = scmp.eq.s32.totalorder %s18, 1
    %p140 = por %p138, %p139
    %p142 = scmp.ne.s32.totalorder %s127, %s141
    %p143 = scmp.eq.s32.totalorder %s18, 0
    %p144 = por %p142, %p143
    %s145 = ssub.s32 %s19, %s31
    %s146 = ssub.s32 %s20, %s27
    %s147 = sor.u32 %s145, %s146
    %p148 = scmp.eq.s32.totalorder %s147, 0
    %s150 = sadd.s32 %s149, 1
    %s151 = scalar_select %p148, %s149, %s150
    %p154 = pneg %p148
    %p155 = scmp.eq.s32.totalorder %s12, 1
    %p156 = por %p154, %p155
    %p157 = scmp.ne.s32.totalorder %s149, %s152
    %p158 = scmp.eq.s32.totalorder %s12, 0
    %p159 = por %p157, %p158
    %p160 = scmp.ne.s32.totalorder %s149, %s152
    %p161 = scmp.eq.s32.totalorder %s17, 1
    %p162 = por %p160, %p161
    %p163 = scmp.ne.s32.totalorder %s152, %s153
    %p164 = scmp.eq.s32.totalorder %s17, 0
    %p165 = por %p163, %p164
    %p166 = scmp.ne.s32.totalorder %s152, %s153
    %p167 = scmp.eq.s32.totalorder %s18, 1
    %p168 = por %p166, %p167
    %p170 = scmp.ne.s32.totalorder %s153, %s169
    %p171 = scmp.eq.s32.totalorder %s18, 0
    %p172 = por %p170, %p171
    %s173 = ssub.s32 %s19, %s31
    %s174 = ssub.s32 %s20, %s27
    %s175 = sor.u32 %s173, %s174
    %p176 = scmp.eq.s32.totalorder %s175, 0
    %s178 = sadd.s32 %s177, 1
    %s179 = scalar_select %p176, %s177, %s178
    %p182 = pneg %p176
    %p183 = scmp.eq.s32.totalorder %s12, 1
    %p184 = por %p182, %p183
    %p185 = scmp.ne.s32.totalorder %s177, %s180
    %p186 = scmp.eq.s32.totalorder %s12, 0
    %p187 = por %p185, %p186
    %p188 = scmp.ne.s32.totalorder %s177, %s180
    %p189 = scmp.eq.s32.totalorder %s17, 1
    %p190 = por %p188, %p189
    %p191 = scmp.ne.s32.totalorder %s180, %s181
    %p192 = scmp.eq.s32.totalorder %s17, 0
    %p193 = por %p191, %p192
    %p194 = scmp.ne.s32.totalorder %s180, %s181
    %p195 = scmp.eq.s32.totalorder %s18, 1
    %p196 = por %p194, %p195
    %p198 = scmp.ne.s32.totalorder %s181, %s197
    %p199 = scmp.eq.s32.totalorder %s18, 0
    %p200 = por %p198, %p199
    %p201 = scmp.le.s32.totalorder 1, %s12
    %p202 = scmp.lt.s32.totalorder %s12, 3
    %p203 = pnand %p201, %p202
    %p204 = pneg %p203
    // Predicated region
    $region9: #{conv2d_module.2} parent=5 // pred_check
      _
    $region10: #{conv2d_module.2} parent=5 // pred_check_branch
      %206 = sbr.rel (%p203) target = $region12
    $region11: #{conv2d_module.2} parent=5 // pred_region
      %s207 = ssub.s32 %s12, 1
      // Predicated region
      $region13: #{conv2d_module.2} parent=11 // pred_check
        %p208 = pneg %p137
      $region14: #{conv2d_module.2} parent=11 // pred_check_branch
        %210 = sbr.rel (%p208) target = $region16
      $region15: #{conv2d_module.2} parent=11 // pred_region
        _
      $region16: #{conv2d_module.2} parent=11 // pred_fallthru
        _
    $region12: #{conv2d_module.2} parent=5 // pred_fallthru
      _
    %p211 = scmp.lt.s32.totalorder %s12, 2
    // Predicated region
    $region17: #{conv2d_module.2} parent=5 // pred_check
      %p212 = pneg %p211
    $region18: #{conv2d_module.2} parent=5 // pred_check_branch
      %214 = sbr.rel (%p212) target = $region20
    $region19: #{conv2d_module.2} parent=5 // pred_region
      // Predicated region
      $region21: #{conv2d_module.2} parent=19 // pred_check
        %p215 = pneg %p46
      $region22: #{conv2d_module.2} parent=19 // pred_check_branch
        %217 = sbr.rel (%p215) target = $region24
      $region23: #{conv2d_module.2} parent=19 // pred_region
        %s218 = smul.u32 16, %s20
        %s219 = ssub.s32 18, %s218
        %p220 = scmp.lt.s32.totalorder %s219, 16
        %s221 = scalar_select %p220, %s219, 16
        %s222 = smul.u32 64, %s221
        %s223 = smul.u32 %s222, 3
        %p224 = scmp.lt.s32.totalorder %s19, 1
        %s225 = scalar_select %p224, %s19, 1
        %p226 = scmp.lt.s32.totalorder %s218, 17
        %s227 = scalar_select %p226, %s218, 17
        %s228 = smul.addr %s227, 3
        %s229 = smul.addr %s225, 54
        %s230 = sadd.s32 %s228, %s229
        %s231 = smul.addr %s230, 4
        %s232 = scalar_lea.vmem %s0, %s231
        %s233 = smul.u32 16, %s20
        %s234 = ssub.s32 18, %s233
        %p235 = scmp.lt.s32.totalorder %s234, 16
        %s236 = scalar_select %p235, %s234, 16
        %s237 = smul.u32 64, %s236
        %s238 = smul.u32 %s237, 3
      $region24: #{conv2d_module.2} parent=19 // pred_fallthru
        _
      // Predicated region
      $region25: #{conv2d_module.2} parent=19 // pred_check
        %p239 = pneg %p78
      $region26: #{conv2d_module.2} parent=19 // pred_check_branch
        %241 = sbr.rel (%p239) target = $region28
      $region27: #{conv2d_module.2} parent=19 // pred_region
        %s242 = smul.u32 %s20, 16
        %s243 = sadd.s32 %s242, 16
        %p244 = scmp.lt.s32.totalorder %s19, 1
        %s245 = scalar_select %p244, %s19, 1
        %p246 = scmp.lt.s32.totalorder %s243, 17
        %s247 = scalar_select %p246, %s243, 17
        %s248 = smul.addr %s247, 3
        %s249 = smul.addr %s245, 54
        %s250 = sadd.s32 %s248, %s249
        %s251 = smul.addr %s250, 4
        %s252 = scalar_lea.vmem %s1, %s251
        %s253 = smul.u32 %s20, 16
        %s254 = sadd.s32 %s253, 16
      $region28: #{conv2d_module.2} parent=19 // pred_fallthru
        _
      // Predicated region
      $region29: #{conv2d_module.2} parent=19 // pred_check
        %p255 = pneg %p110
      $region30: #{conv2d_module.2} parent=19 // pred_check_branch
        %257 = sbr.rel (%p255) target = $region32
      $region31: #{conv2d_module.2} parent=19 // pred_region
        %s258 = smul.u32 %s20, 16
        %s259 = sadd.s32 %s258, 17
        %p260 = scmp.lt.s32.totalorder %s19, 1
        %s261 = scalar_select %p260, %s19, 1
        %p262 = scmp.lt.s32.totalorder %s259, 17
        %s263 = scalar_select %p262, %s259, 17
        %s264 = smul.addr %s263, 3
        %s265 = smul.addr %s261, 54
        %s266 = sadd.s32 %s264, %s265
        %s267 = smul.addr %s266, 4
        %s268 = scalar_lea.vmem %s2, %s267
        %s269 = smul.u32 %s20, 16
        %s270 = sadd.s32 %s269, 17
      $region32: #{conv2d_module.2} parent=19 // pred_fallthru
        _
    $region20: #{conv2d_module.2} parent=5 // pred_fallthru
      _
    %p271 = scmp.le.s32.totalorder 1, %s12
    %p272 = scmp.lt.s32.totalorder %s12, 3
    %p273 = pnand %p271, %p272
    %p274 = pneg %p273
    // Predicated region
    $region33: #{conv2d_module.2} parent=5 // pred_check
      _
    $region34: #{conv2d_module.2} parent=5 // pred_check_branch
      %276 = sbr.rel (%p273) target = $region36
    $region35: #{conv2d_module.2} parent=5 // pred_region
      %s277 = ssub.s32 %s12, 1
      %s278 = smul.u32 16, %s22
      %s279 = ssub.s32 18, %s278
      %p280 = scmp.lt.s32.totalorder %s279, 16
      %s281 = scalar_select %p280, %s279, 16
      %s282 = smul.u32 64, %s281
      %s283 = smul.u32 %s282, 3
      %p284 = scmp.lt.s32.totalorder %s21, 1
      %s285 = scalar_select %p284, %s21, 1
      %p286 = scmp.lt.s32.totalorder %s278, 17
      %s287 = scalar_select %p286, %s278, 17
      %s288 = smul.addr %s287, 3
      %s289 = smul.addr %s285, 54
      %s290 = sadd.s32 %s288, %s289
      %s291 = smul.addr %s290, 4
      %s292 = scalar_lea.vmem %s0, %s291
      %p293 = pneg %p52
      %p294 = pneg %p49
      %s295 = smul.u32 %s22, 16
      %s296 = sadd.s32 %s295, 16
      %p297 = scmp.lt.s32.totalorder %s21, 1
      %s298 = scalar_select %p297, %s21, 1
      %p299 = scmp.lt.s32.totalorder %s296, 17
      %s300 = scalar_select %p299, %s296, 17
      %s301 = smul.addr %s300, 3
      %s302 = smul.addr %s298, 54
      %s303 = sadd.s32 %s301, %s302
      %s304 = smul.addr %s303, 4
      %s305 = scalar_lea.vmem %s1, %s304
      %p306 = pneg %p84
      %p307 = pneg %p81
      %s308 = smul.u32 %s22, 16
      %s309 = sadd.s32 %s308, 17
      %p310 = scmp.lt.s32.totalorder %s21, 1
      %s311 = scalar_select %p310, %s21, 1
      %p312 = scmp.lt.s32.totalorder %s309, 17
      %s313 = scalar_select %p312, %s309, 17
      %s314 = smul.addr %s313, 3
      %s315 = smul.addr %s311, 54
      %s316 = sadd.s32 %s314, %s315
      %s317 = smul.addr %s316, 4
      %s318 = scalar_lea.vmem %s2, %s317
      %p319 = pneg %p116
      %p320 = pneg %p113
      %p321 = pneg %p137
      %p322 = pneg %p134
      %p323 = pneg %p165
      %p324 = pneg %p162
      %s325 = smul.u32 16, %s22
      %p326 = scmp.lt.s32.totalorder %s21, 1
      %s327 = scalar_select %p326, %s21, 1
      %p328 = scmp.lt.s32.totalorder %s325, 15
      %s329 = scalar_select %p328, %s325, 15
      %s330 = smul.addr %s329, 2
      %s331 = smul.addr %s327, 32
      %s332 = sadd.s32 %s330, %s331
      %s333 = smul.addr %s332, 8
      %s334 = scalar_lea.vmem %s4, %s333
      %p335 = pneg %p193
      %p336 = pneg %p190
      %p337 = scmp.lt.s32.totalorder %s21, 1
      %s338 = scalar_select %p337, %s21, 1
      %p339 = scmp.lt.s32.totalorder %s22, 0
      %s340 = scalar_select %p339, %s22, 0
      %s341 = sadd.s32 %s340, %s338
      %s342 = smul.addr %s341, 2
      %s343 = scalar_lea.vmem %s5, %s342
      %s344 = smul.u32 16, %s22
      %s345 = ssub.s32 18, %s344
      %p346 = scmp.lt.s32.totalorder %s345, 16
      %s347 = scalar_select %p346, %s345, 16
      %s348 = smul.u32 64, %s347
      %s349 = smul.u32 %s348, 3
      %p350 = scmp.lt.s32.totalorder %s21, 1
      %s351 = scalar_select %p350, %s21, 1
      %p352 = scmp.lt.s32.totalorder %s344, 17
      %s353 = scalar_select %p352, %s344, 17
      %s354 = smul.addr %s353, 3
      %s355 = smul.addr %s351, 54
      %s356 = sadd.s32 %s354, %s355
      %s357 = smul.addr %s356, 4
      %s358 = scalar_lea.vmem %s0, %s357
      %s359 = smul.u32 16, %s22
      %s360 = ssub.s32 18, %s359
      %p361 = scmp.lt.s32.totalorder %s360, 16
      %s362 = scalar_select %p361, %s360, 16
      %s363 = smul.u32 64, %s362
      %s364 = smul.u32 %s363, 3
      %s365 = smul.u32 %s22, 16
      %s366 = sadd.s32 %s365, 16
      %p367 = scmp.lt.s32.totalorder %s21, 1
      %s368 = scalar_select %p367, %s21, 1
      %p369 = scmp.lt.s32.totalorder %s366, 17
      %s370 = scalar_select %p369, %s366, 17
      %s371 = smul.addr %s370, 3
      %s372 = smul.addr %s368, 54
      %s373 = sadd.s32 %s371, %s372
      %s374 = smul.addr %s373, 4
      %s375 = scalar_lea.vmem %s1, %s374
      %s376 = smul.u32 %s22, 16
      %s377 = sadd.s32 %s376, 16
      %s378 = smul.u32 %s22, 16
      %s379 = sadd.s32 %s378, 17
      %p380 = scmp.lt.s32.totalorder %s21, 1
      %s381 = scalar_select %p380, %s21, 1
      %p382 = scmp.lt.s32.totalorder %s379, 17
      %s383 = scalar_select %p382, %s379, 17
      %s384 = smul.addr %s383, 3
      %s385 = smul.addr %s381, 54
      %s386 = sadd.s32 %s384, %s385
      %s387 = smul.addr %s386, 4
      %s388 = scalar_lea.vmem %s2, %s387
      %s389 = smul.u32 %s22, 16
      %s390 = sadd.s32 %s389, 17
      %s391 = smul.u32 16, %s22
      %p392 = scmp.lt.s32.totalorder %s21, 1
      %s393 = scalar_select %p392, %s21, 1
      %p394 = scmp.lt.s32.totalorder %s391, 15
      %s395 = scalar_select %p394, %s391, 15
      %s396 = smul.addr %s395, 2
      %s397 = smul.addr %s393, 32
      %s398 = sadd.s32 %s396, %s397
      %s399 = smul.addr %s398, 8
      %s400 = scalar_lea.vmem %s4, %s399
      %s401 = smul.u32 16, %s22
      %p402 = scmp.lt.s32.totalorder %s21, 1
      %s403 = scalar_select %p402, %s21, 1
      %p404 = scmp.lt.s32.totalorder %s22, 0
      %s405 = scalar_select %p404, %s22, 0
      %s406 = sadd.s32 %s405, %s403
      %s407 = smul.addr %s406, 2
      %s408 = scalar_lea.vmem %s5, %s407
      %v410 = vld [vmem:[%s358] sm:$0xf]
      %v411 = vld [vmem:[%s358 + $0x4] sm:$0xf]
      %v412 = vld [vmem:[%s358 + $0x8] sm:$0x1]
      %v413 = vld [vmem:[%s358 + $0xc] sm:$0xf]
      %v414 = vld [vmem:[%s358 + $0x10] sm:$0xf]
      %v415 = vld [vmem:[%s358 + $0x14] sm:$0x1]
      %v416 = vld [vmem:[%s358 + $0x18] sm:$0xf]
      %v417 = vld [vmem:[%s358 + $0x1c] sm:$0xf]
      %v418 = vld [vmem:[%s358 + $0x20] sm:$0x1]
      %v419 = vld [vmem:[%s358 + $0x24] sm:$0xf]
      %v420 = vld [vmem:[%s358 + $0x28] sm:$0xf]
      %v421 = vld [vmem:[%s358 + $0x2c] sm:$0x1]
      %v422 = vld [vmem:[%s358 + $0x30] sm:$0xf]
      %v423 = vld [vmem:[%s358 + $0x34] sm:$0xf]
      %v424 = vld [vmem:[%s358 + $0x38] sm:$0x1]
      %v425 = vld [vmem:[%s358 + $0x3c] sm:$0xf]
      %v426 = vld [vmem:[%s358 + $0x40] sm:$0xf]
      %v427 = vld [vmem:[%s358 + $0x44] sm:$0x1]
      %v428 = vld [vmem:[%s358 + $0x48] sm:$0xf]
      %v429 = vld [vmem:[%s358 + $0x4c] sm:$0xf]
      %v430 = vld [vmem:[%s358 + $0x50] sm:$0x1]
      %v431 = vld [vmem:[%s358 + $0x54] sm:$0xf]
      %v432 = vld [vmem:[%s358 + $0x58] sm:$0xf]
      %v433 = vld [vmem:[%s358 + $0x5c] sm:$0x1]
      %v434 = vld [vmem:[%s358 + $0x60] sm:$0xf]
      %v435 = vld [vmem:[%s358 + $0x64] sm:$0xf]
      %v436 = vld [vmem:[%s358 + $0x68] sm:$0x1]
      %v437 = vld [vmem:[%s358 + $0x6c] sm:$0xf]
      %v438 = vld [vmem:[%s358 + $0x70] sm:$0xf]
      %v439 = vld [vmem:[%s358 + $0x74] sm:$0x1]
      %v440 = vld [vmem:[%s358 + $0x78] sm:$0xf]
      %v441 = vld [vmem:[%s358 + $0x7c] sm:$0xf]
      %v442 = vld [vmem:[%s358 + $0x80] sm:$0x1]
      %v443 = vld [vmem:[%s358 + $0x84] sm:$0xf]
      %v444 = vld [vmem:[%s358 + $0x88] sm:$0xf]
      %v445 = vld [vmem:[%s358 + $0x8c] sm:$0x1]
      %v446 = vld [vmem:[%s358 + $0x90] sm:$0xf]
      %v447 = vld [vmem:[%s358 + $0x94] sm:$0xf]
      %v448 = vld [vmem:[%s358 + $0x98] sm:$0x1]
      %v449 = vld [vmem:[%s358 + $0x9c] sm:$0xf]
      %v450 = vld [vmem:[%s358 + $0xa0] sm:$0xf]
      %v451 = vld [vmem:[%s358 + $0xa4] sm:$0x1]
      %v452 = vld [vmem:[%s358 + $0xa8] sm:$0xf]
      %v453 = vld [vmem:[%s358 + $0xac] sm:$0xf]
      %v454 = vld [vmem:[%s358 + $0xb0] sm:$0x1]
      %v455 = vld [vmem:[%s358 + $0xb4] sm:$0xf]
      %v456 = vld [vmem:[%s358 + $0xb8] sm:$0xf]
      %v457 = vld [vmem:[%s358 + $0xbc] sm:$0x1]
      %v458 = vld [vmem:[%s375] sm:$0xf]
      %v459 = vld [vmem:[%s375 + $0x4] sm:$0xf]
      %v460 = vld [vmem:[%s375 + $0x8] sm:$0x1]
      %v461 = vld [vmem:[%s388] sm:$0xf]
      %v462 = vld [vmem:[%s388 + $0x4] sm:$0xf]
      %v463 = vld [vmem:[%s388 + $0x8] sm:$0x1]
      %v496 = vunpack.c.l.b16 %v410
      %v497 = vunpack.c.l.b16 %v411
      %v498 = vunpack.c.l.b16 %v413
      %v499 = vunpack.c.l.b16 %v414
      %v500 = vunpack.c.l.b16 %v416
      %v501 = vunpack.c.l.b16 %v417
      %v502 = vunpack.c.l.b16 %v419
      %v503 = vunpack.c.l.b16 %v420
      %v504 = vunpack.c.l.b16 %v422
      %v505 = vunpack.c.l.b16 %v423
      %v506 = vunpack.c.l.b16 %v425
      %v507 = vunpack.c.l.b16 %v426
      %v508 = vunpack.c.l.b16 %v428
      %v509 = vunpack.c.l.b16 %v429
      %v510 = vunpack.c.l.b16 %v431
      %v511 = vunpack.c.l.b16 %v432
      %v512 = vunpack.c.l.b16 %v434
      %v513 = vunpack.c.l.b16 %v435
      %v514 = vunpack.c.l.b16 %v437
      %v515 = vunpack.c.l.b16 %v438
      %v516 = vunpack.c.l.b16 %v440
      %v517 = vunpack.c.l.b16 %v441
      %v518 = vunpack.c.l.b16 %v443
      %v519 = vunpack.c.l.b16 %v444
      %v520 = vunpack.c.l.b16 %v446
      %v521 = vunpack.c.l.b16 %v447
      %v522 = vunpack.c.l.b16 %v449
      %v523 = vunpack.c.l.b16 %v450
      %v524 = vunpack.c.l.b16 %v452
      %v525 = vunpack.c.l.b16 %v453
      %v526 = vunpack.c.l.b16 %v455
      %v527 = vunpack.c.l.b16 %v456
      %v528 = vpack.c.b16 %v497, %v496
      %v529 = vpack.c.b16 %v499, %v498
      %v530 = vpack.c.b16 %v501, %v500
      %v531 = vpack.c.b16 %v503, %v502
      %v532 = vpack.c.b16 %v505, %v504
      %v533 = vpack.c.b16 %v507, %v506
      %v534 = vpack.c.b16 %v509, %v508
      %v535 = vpack.c.b16 %v511, %v510
      %v536 = vpack.c.b16 %v513, %v512
      %v537 = vpack.c.b16 %v515, %v514
      %v538 = vpack.c.b16 %v517, %v516
      %v539 = vpack.c.b16 %v519, %v518
      %v540 = vpack.c.b16 %v521, %v520
      %v541 = vpack.c.b16 %v523, %v522
      %v542 = vpack.c.b16 %v525, %v524
      %v543 = vpack.c.b16 %v527, %v526
      %v560 = vunpack.c.l.b16 %v412
      %v561 = vunpack.c.l.b16 %v415
      %v562 = vunpack.c.l.b16 %v418
      %v563 = vunpack.c.l.b16 %v421
      %v564 = vunpack.c.l.b16 %v424
      %v565 = vunpack.c.l.b16 %v427
      %v566 = vunpack.c.l.b16 %v430
      %v567 = vunpack.c.l.b16 %v433
      %v568 = vunpack.c.l.b16 %v436
      %v569 = vunpack.c.l.b16 %v439
      %v570 = vunpack.c.l.b16 %v442
      %v571 = vunpack.c.l.b16 %v445
      %v572 = vunpack.c.l.b16 %v448
      %v573 = vunpack.c.l.b16 %v451
      %v574 = vunpack.c.l.b16 %v454
      %v575 = vunpack.c.l.b16 %v457
      %v576 = vpack.c.b16 %v560, %v560
      %v577 = vpack.c.b16 %v561, %v561
      %v578 = vpack.c.b16 %v562, %v562
      %v579 = vpack.c.b16 %v563, %v563
      %v580 = vpack.c.b16 %v564, %v564
      %v581 = vpack.c.b16 %v565, %v565
      %v582 = vpack.c.b16 %v566, %v566
      %v583 = vpack.c.b16 %v567, %v567
      %v584 = vpack.c.b16 %v568, %v568
      %v585 = vpack.c.b16 %v569, %v569
      %v586 = vpack.c.b16 %v570, %v570
      %v587 = vpack.c.b16 %v571, %v571
      %v588 = vpack.c.b16 %v572, %v572
      %v589 = vpack.c.b16 %v573, %v573
      %v590 = vpack.c.b16 %v574, %v574
      %v591 = vpack.c.b16 %v575, %v575
      %vm592 = vsmask.f32 7424
      %v594 = vshrl.u32 %v528, 16
      %v596 = vshll.u32 %v528, 16
      %v598 = vrot.slane %v596, 1
      %v599 = vor.u32 %v594, %v598
      %v601 = vshll.u32 %v576, 16
      %v603 = vrot.slane %v601, 1
      %v604 = vsel %vm592, %v599, %v603
      %v606 = vshrl.u32 %v529, 16
      %v608 = vshll.u32 %v529, 16
      %v610 = vrot.slane %v608, 1
      %v611 = vor.u32 %v606, %v610
      %v613 = vshll.u32 %v577, 16
      %v615 = vrot.slane %v613, 1
      %v616 = vsel %vm592, %v611, %v615
      %v618 = vshrl.u32 %v530, 16
      %v620 = vshll.u32 %v530, 16
      %v622 = vrot.slane %v620, 1
      %v623 = vor.u32 %v618, %v622
      %v625 = vshll.u32 %v578, 16
      %v627 = vrot.slane %v625, 1
      %v628 = vsel %vm592, %v623, %v627
      %v630 = vshrl.u32 %v531, 16
      %v632 = vshll.u32 %v531, 16
      %v634 = vrot.slane %v632, 1
      %v635 = vor.u32 %v630, %v634
      %v637 = vshll.u32 %v579, 16
      %v639 = vrot.slane %v637, 1
      %v640 = vsel %vm592, %v635, %v639
      %v642 = vshrl.u32 %v532, 16
      %v644 = vshll.u32 %v532, 16
      %v646 = vrot.slane %v644, 1
      %v647 = vor.u32 %v642, %v646
      %v649 = vshll.u32 %v580, 16
      %v651 = vrot.slane %v649, 1
      %v652 = vsel %vm592, %v647, %v651
      %v654 = vshrl.u32 %v533, 16
      %v656 = vshll.u32 %v533, 16
      %v658 = vrot.slane %v656, 1
      %v659 = vor.u32 %v654, %v658
      %v661 = vshll.u32 %v581, 16
      %v663 = vrot.slane %v661, 1
      %v664 = vsel %vm592, %v659, %v663
      %v666 = vshrl.u32 %v534, 16
      %v668 = vshll.u32 %v534, 16
      %v670 = vrot.slane %v668, 1
      %v671 = vor.u32 %v666, %v670
      %v673 = vshll.u32 %v582, 16
      %v675 = vrot.slane %v673, 1
      %v676 = vsel %vm592, %v671, %v675
      %v678 = vshrl.u32 %v535, 16
      %v680 = vshll.u32 %v535, 16
      %v682 = vrot.slane %v680, 1
      %v683 = vor.u32 %v678, %v682
      %v685 = vshll.u32 %v583, 16
      %v687 = vrot.slane %v685, 1
      %v688 = vsel %vm592, %v683, %v687
      %v690 = vshrl.u32 %v536, 16
      %v692 = vshll.u32 %v536, 16
      %v694 = vrot.slane %v692, 1
      %v695 = vor.u32 %v690, %v694
      %v697 = vshll.u32 %v584, 16
      %v699 = vrot.slane %v697, 1
      %v700 = vsel %vm592, %v695, %v699
      %v702 = vshrl.u32 %v537, 16
      %v704 = vshll.u32 %v537, 16
      %v706 = vrot.slane %v704, 1
      %v707 = vor.u32 %v702, %v706
      %v709 = vshll.u32 %v585, 16
      %v711 = vrot.slane %v709, 1
      %v712 = vsel %vm592, %v707, %v711
      %v714 = vshrl.u32 %v538, 16
      %v716 = vshll.u32 %v538, 16
      %v718 = vrot.slane %v716, 1
      %v719 = vor.u32 %v714, %v718
      %v721 = vshll.u32 %v586, 16
      %v723 = vrot.slane %v721, 1
      %v724 = vsel %vm592, %v719, %v723
      %v726 = vshrl.u32 %v539, 16
      %v728 = vshll.u32 %v539, 16
      %v730 = vrot.slane %v728, 1
      %v731 = vor.u32 %v726, %v730
      %v733 = vshll.u32 %v587, 16
      %v735 = vrot.slane %v733, 1
      %v736 = vsel %vm592, %v731, %v735
      %v738 = vshrl.u32 %v540, 16
      %v740 = vshll.u32 %v540, 16
      %v742 = vrot.slane %v740, 1
      %v743 = vor.u32 %v738, %v742
      %v745 = vshll.u32 %v588, 16
      %v747 = vrot.slane %v745, 1
      %v748 = vsel %vm592, %v743, %v747
      %v750 = vshrl.u32 %v541, 16
      %v752 = vshll.u32 %v541, 16
      %v754 = vrot.slane %v752, 1
      %v755 = vor.u32 %v750, %v754
      %v757 = vshll.u32 %v589, 16
      %v759 = vrot.slane %v757, 1
      %v760 = vsel %vm592, %v755, %v759
      %v762 = vshrl.u32 %v542, 16
      %v764 = vshll.u32 %v542, 16
      %v766 = vrot.slane %v764, 1
      %v767 = vor.u32 %v762, %v766
      %v769 = vshll.u32 %v590, 16
      %v771 = vrot.slane %v769, 1
      %v772 = vsel %vm592, %v767, %v771
      %v774 = vshrl.u32 %v543, 16
      %v776 = vshll.u32 %v543, 16
      %v778 = vrot.slane %v776, 1
      %v779 = vor.u32 %v774, %v778
      %v781 = vshll.u32 %v591, 16
      %v783 = vrot.slane %v781, 1
      %v784 = vsel %vm592, %v779, %v783
      %785 = vrot.lane.b32.xlu0 %v604, 4
      %v786 = vpop.permute.xlu0 %785
      %787 = vrot.lane.b32.xlu0 %v616, 4
      %v788 = vpop.permute.xlu0 %787
      %789 = vrot.lane.b32.xlu0 %v628, 4
      %v790 = vpop.permute.xlu0 %789
      %791 = vrot.lane.b32.xlu0 %v640, 4
      %v792 = vpop.permute.xlu0 %791
      %793 = vrot.lane.b32.xlu0 %v652, 4
      %v794 = vpop.permute.xlu0 %793
      %795 = vrot.lane.b32.xlu0 %v664, 4
      %v796 = vpop.permute.xlu0 %795
      %797 = vrot.lane.b32.xlu0 %v676, 4
      %v798 = vpop.permute.xlu0 %797
      %799 = vrot.lane.b32.xlu0 %v688, 4
      %v800 = vpop.permute.xlu0 %799
      %801 = vrot.lane.b32.xlu0 %v700, 4
      %v802 = vpop.permute.xlu0 %801
      %803 = vrot.lane.b32.xlu0 %v712, 4
      %v804 = vpop.permute.xlu0 %803
      %805 = vrot.lane.b32.xlu0 %v724, 4
      %v806 = vpop.permute.xlu0 %805
      %807 = vrot.lane.b32.xlu0 %v736, 4
      %v808 = vpop.permute.xlu0 %807
      %809 = vrot.lane.b32.xlu0 %v748, 4
      %v810 = vpop.permute.xlu0 %809
      %811 = vrot.lane.b32.xlu0 %v760, 4
      %v812 = vpop.permute.xlu0 %811
      %813 = vrot.lane.b32.xlu0 %v772, 4
      %v814 = vpop.permute.xlu0 %813
      %815 = vrot.lane.b32.xlu0 %v784, 4
      %v816 = vpop.permute.xlu0 %815
      %vm817 = vcmask 1046528
      %v818 = vrot.slane %v528, 1
      %v819 = vrot.slane %v576, 1
      %v820 = vsel %vm817, %v818, %v819
      %v821 = vrot.slane %v529, 1
      %v822 = vrot.slane %v577, 1
      %v823 = vsel %vm817, %v821, %v822
      %v824 = vrot.slane %v530, 1
      %v825 = vrot.slane %v578, 1
      %v826 = vsel %vm817, %v824, %v825
      %v827 = vrot.slane %v531, 1
      %v828 = vrot.slane %v579, 1
      %v829 = vsel %vm817, %v827, %v828
      %v830 = vrot.slane %v532, 1
      %v831 = vrot.slane %v580, 1
      %v832 = vsel %vm817, %v830, %v831
      %v833 = vrot.slane %v533, 1
      %v834 = vrot.slane %v581, 1
      %v835 = vsel %vm817, %v833, %v834
      %v836 = vrot.slane %v534, 1
      %v837 = vrot.slane %v582, 1
      %v838 = vsel %vm817, %v836, %v837
      %v839 = vrot.slane %v535, 1
      %v840 = vrot.slane %v583, 1
      %v841 = vsel %vm817, %v839, %v840
      %v842 = vrot.slane %v536, 1
      %v843 = vrot.slane %v584, 1
      %v844 = vsel %vm817, %v842, %v843
      %v845 = vrot.slane %v537, 1
      %v846 = vrot.slane %v585, 1
      %v847 = vsel %vm817, %v845, %v846
      %v848 = vrot.slane %v538, 1
      %v849 = vrot.slane %v586, 1
      %v850 = vsel %vm817, %v848, %v849
      %v851 = vrot.slane %v539, 1
      %v852 = vrot.slane %v587, 1
      %v853 = vsel %vm817, %v851, %v852
      %v854 = vrot.slane %v540, 1
      %v855 = vrot.slane %v588, 1
      %v856 = vsel %vm817, %v854, %v855
      %v857 = vrot.slane %v541, 1
      %v858 = vrot.slane %v589, 1
      %v859 = vsel %vm817, %v857, %v858
      %v860 = vrot.slane %v542, 1
      %v861 = vrot.slane %v590, 1
      %v862 = vsel %vm817, %v860, %v861
      %v863 = vrot.slane %v543, 1
      %v864 = vrot.slane %v591, 1
      %v865 = vsel %vm817, %v863, %v864
      %866 = vrot.lane.b32.xlu0 %v820, 8
      %v867 = vpop.permute.xlu0 %866
      %868 = vrot.lane.b32.xlu0 %v823, 8
      %v869 = vpop.permute.xlu0 %868
      %870 = vrot.lane.b32.xlu0 %v826, 8
      %v871 = vpop.permute.xlu0 %870
      %872 = vrot.lane.b32.xlu0 %v829, 8
      %v873 = vpop.permute.xlu0 %872
      %874 = vrot.lane.b32.xlu0 %v832, 8
      %v875 = vpop.permute.xlu0 %874
      %876 = vrot.lane.b32.xlu0 %v835, 8
      %v877 = vpop.permute.xlu0 %876
      %878 = vrot.lane.b32.xlu0 %v838, 8
      %v879 = vpop.permute.xlu0 %878
      %880 = vrot.lane.b32.xlu0 %v841, 8
      %v881 = vpop.permute.xlu0 %880
      %882 = vrot.lane.b32.xlu0 %v844, 8
      %v883 = vpop.permute.xlu0 %882
      %884 = vrot.lane.b32.xlu0 %v847, 8
      %v885 = vpop.permute.xlu0 %884
      %886 = vrot.lane.b32.xlu0 %v850, 8
      %v887 = vpop.permute.xlu0 %886
      %888 = vrot.lane.b32.xlu0 %v853, 8
      %v889 = vpop.permute.xlu0 %888
      %890 = vrot.lane.b32.xlu0 %v856, 8
      %v891 = vpop.permute.xlu0 %890
      %892 = vrot.lane.b32.xlu0 %v859, 8
      %v893 = vpop.permute.xlu0 %892
      %894 = vrot.lane.b32.xlu0 %v862, 8
      %v895 = vpop.permute.xlu0 %894
      %896 = vrot.lane.b32.xlu0 %v865, 8
      %v897 = vpop.permute.xlu0 %896
      %v900 = vunpack.c.l.b16 %v458
      %v901 = vunpack.c.l.b16 %v459
      %v902 = vpack.c.b16 %v901, %v900
      %903 = vrot.lane.b32.xlu0 %v529, 12
      %v904 = vpop.permute.xlu0 %903
      %905 = vrot.lane.b32.xlu0 %v530, 12
      %v906 = vpop.permute.xlu0 %905
      %907 = vrot.lane.b32.xlu0 %v531, 12
      %v908 = vpop.permute.xlu0 %907
      %909 = vrot.lane.b32.xlu0 %v532, 12
      %v910 = vpop.permute.xlu0 %909
      %911 = vrot.lane.b32.xlu0 %v533, 12
      %v912 = vpop.permute.xlu0 %911
      %913 = vrot.lane.b32.xlu0 %v534, 12
      %v914 = vpop.permute.xlu0 %913
      %915 = vrot.lane.b32.xlu0 %v535, 12
      %v916 = vpop.permute.xlu0 %915
      %917 = vrot.lane.b32.xlu0 %v536, 12
      %v918 = vpop.permute.xlu0 %917
      %919 = vrot.lane.b32.xlu0 %v537, 12
      %v920 = vpop.permute.xlu0 %919
      %921 = vrot.lane.b32.xlu0 %v538, 12
      %v922 = vpop.permute.xlu0 %921
      %923 = vrot.lane.b32.xlu0 %v539, 12
      %v924 = vpop.permute.xlu0 %923
      %925 = vrot.lane.b32.xlu0 %v540, 12
      %v926 = vpop.permute.xlu0 %925
      %927 = vrot.lane.b32.xlu0 %v541, 12
      %v928 = vpop.permute.xlu0 %927
      %929 = vrot.lane.b32.xlu0 %v542, 12
      %v930 = vpop.permute.xlu0 %929
      %931 = vrot.lane.b32.xlu0 %v543, 12
      %v932 = vpop.permute.xlu0 %931
      %933 = vrot.lane.b32.xlu0 %v902, 12
      %v934 = vpop.permute.xlu0 %933
      %v936 = vunpack.c.l.b16 %v460
      %v937 = vpack.c.b16 %v936, %v936
      %v939 = vshrl.u32 %v902, 16
      %v941 = vshll.u32 %v902, 16
      %v943 = vrot.slane %v941, 1
      %v944 = vor.u32 %v939, %v943
      %v946 = vshll.u32 %v937, 16
      %v948 = vrot.slane %v946, 1
      %v949 = vsel %vm592, %v944, %v948
      %950 = vrot.lane.b32.xlu0 %v616, 16
      %v951 = vpop.permute.xlu0 %950
      %952 = vrot.lane.b32.xlu0 %v628, 16
      %v953 = vpop.permute.xlu0 %952
      %954 = vrot.lane.b32.xlu0 %v640, 16
      %v955 = vpop.permute.xlu0 %954
      %956 = vrot.lane.b32.xlu0 %v652, 16
      %v957 = vpop.permute.xlu0 %956
      %958 = vrot.lane.b32.xlu0 %v664, 16
      %v959 = vpop.permute.xlu0 %958
      %960 = vrot.lane.b32.xlu0 %v676, 16
      %v961 = vpop.permute.xlu0 %960
      %962 = vrot.lane.b32.xlu0 %v688, 16
      %v963 = vpop.permute.xlu0 %962
      %964 = vrot.lane.b32.xlu0 %v700, 16
      %v965 = vpop.permute.xlu0 %964
      %966 = vrot.lane.b32.xlu0 %v712, 16
      %v967 = vpop.permute.xlu0 %966
      %968 = vrot.lane.b32.xlu0 %v724, 16
      %v969 = vpop.permute.xlu0 %968
      %970 = vrot.lane.b32.xlu0 %v736, 16
      %v971 = vpop.permute.xlu0 %970
      %972 = vrot.lane.b32.xlu0 %v748, 16
      %v973 = vpop.permute.xlu0 %972
      %974 = vrot.lane.b32.xlu0 %v760, 16
      %v975 = vpop.permute.xlu0 %974
      %976 = vrot.lane.b32.xlu0 %v772, 16
      %v977 = vpop.permute.xlu0 %976
      %978 = vrot.lane.b32.xlu0 %v784, 16
      %v979 = vpop.permute.xlu0 %978
      %980 = vrot.lane.b32.xlu0 %v949, 16
      %v981 = vpop.permute.xlu0 %980
      %v982 = vrot.slane %v902, 1
      %v983 = vrot.slane %v937, 1
      %v984 = vsel %vm817, %v982, %v983
      %985 = vrot.lane.b32.xlu0 %v823, 20
      %v986 = vpop.permute.xlu0 %985
      %987 = vrot.lane.b32.xlu0 %v826, 20
      %v988 = vpop.permute.xlu0 %987
      %989 = vrot.lane.b32.xlu0 %v829, 20
      %v990 = vpop.permute.xlu0 %989
      %991 = vrot.lane.b32.xlu0 %v832, 20
      %v992 = vpop.permute.xlu0 %991
      %993 = vrot.lane.b32.xlu0 %v835, 20
      %v994 = vpop.permute.xlu0 %993
      %995 = vrot.lane.b32.xlu0 %v838, 20
      %v996 = vpop.permute.xlu0 %995
      %997 = vrot.lane.b32.xlu0 %v841, 20
      %v998 = vpop.permute.xlu0 %997
      %999 = vrot.lane.b32.xlu0 %v844, 20
      %v1000 = vpop.permute.xlu0 %999
      %1001 = vrot.lane.b32.xlu0 %v847, 20
      %v1002 = vpop.permute.xlu0 %1001
      %1003 = vrot.lane.b32.xlu0 %v850, 20
      %v1004 = vpop.permute.xlu0 %1003
      %1005 = vrot.lane.b32.xlu0 %v853, 20
      %v1006 = vpop.permute.xlu0 %1005
      %1007 = vrot.lane.b32.xlu0 %v856, 20
      %v1008 = vpop.permute.xlu0 %1007
      %1009 = vrot.lane.b32.xlu0 %v859, 20
      %v1010 = vpop.permute.xlu0 %1009
      %1011 = vrot.lane.b32.xlu0 %v862, 20
      %v1012 = vpop.permute.xlu0 %1011
      %1013 = vrot.lane.b32.xlu0 %v865, 20
      %v1014 = vpop.permute.xlu0 %1013
      %1015 = vrot.lane.b32.xlu0 %v984, 20
      %v1016 = vpop.permute.xlu0 %1015
      %v1019 = vunpack.c.l.b16 %v461
      %v1020 = vunpack.c.l.b16 %v462
      %v1021 = vpack.c.b16 %v1020, %v1019
      %1022 = vrot.lane.b32.xlu0 %v530, 24
      %v1023 = vpop.permute.xlu0 %1022
      %1024 = vrot.lane.b32.xlu0 %v531, 24
      %v1025 = vpop.permute.xlu0 %1024
      %1026 = vrot.lane.b32.xlu0 %v532, 24
      %v1027 = vpop.permute.xlu0 %1026
      %1028 = vrot.lane.b32.xlu0 %v533, 24
      %v1029 = vpop.permute.xlu0 %1028
      %1030 = vrot.lane.b32.xlu0 %v534, 24
      %v1031 = vpop.permute.xlu0 %1030
      %1032 = vrot.lane.b32.xlu0 %v535, 24
      %v1033 = vpop.permute.xlu0 %1032
      %1034 = vrot.lane.b32.xlu0 %v536, 24
      %v1035 = vpop.permute.xlu0 %1034
      %1036 = vrot.lane.b32.xlu0 %v537, 24
      %v1037 = vpop.permute.xlu0 %1036
      %1038 = vrot.lane.b32.xlu0 %v538, 24
      %v1039 = vpop.permute.xlu0 %1038
      %1040 = vrot.lane.b32.xlu0 %v539, 24
      %v1041 = vpop.permute.xlu0 %1040
      %1042 = vrot.lane.b32.xlu0 %v540, 24
      %v1043 = vpop.permute.xlu0 %1042
      %1044 = vrot.lane.b32.xlu0 %v541, 24
      %v1045 = vpop.permute.xlu0 %1044
      %1046 = vrot.lane.b32.xlu0 %v542, 24
      %v1047 = vpop.permute.xlu0 %1046
      %1048 = vrot.lane.b32.xlu0 %v543, 24
      %v1049 = vpop.permute.xlu0 %1048
      %1050 = vrot.lane.b32.xlu0 %v902, 24
      %v1051 = vpop.permute.xlu0 %1050
      %1052 = vrot.lane.b32.xlu0 %v1021, 24
      %v1053 = vpop.permute.xlu0 %1052
      %v1055 = vunpack.c.l.b16 %v463
      %v1056 = vpack.c.b16 %v1055, %v1055
      %v1058 = vshrl.u32 %v1021, 16
      %v1060 = vshll.u32 %v1021, 16
      %v1062 = vrot.slane %v1060, 1
      %v1063 = vor.u32 %v1058, %v1062
      %v1065 = vshll.u32 %v1056, 16
      %v1067 = vrot.slane %v1065, 1
      %v1068 = vsel %vm592, %v1063, %v1067
      %1069 = vrot.lane.b32.xlu0 %v628, 28
      %v1070 = vpop.permute.xlu0 %1069
      %1071 = vrot.lane.b32.xlu0 %v640, 28
      %v1072 = vpop.permute.xlu0 %1071
      %1073 = vrot.lane.b32.xlu0 %v652, 28
      %v1074 = vpop.permute.xlu0 %1073
      %1075 = vrot.lane.b32.xlu0 %v664, 28
      %v1076 = vpop.permute.xlu0 %1075
      %1077 = vrot.lane.b32.xlu0 %v676, 28
      %v1078 = vpop.permute.xlu0 %1077
      %1079 = vrot.lane.b32.xlu0 %v688, 28
      %v1080 = vpop.permute.xlu0 %1079
      %1081 = vrot.lane.b32.xlu0 %v700, 28
      %v1082 = vpop.permute.xlu0 %1081
      %1083 = vrot.lane.b32.xlu0 %v712, 28
      %v1084 = vpop.permute.xlu0 %1083
      %1085 = vrot.lane.b32.xlu0 %v724, 28
      %v1086 = vpop.permute.xlu0 %1085
      %1087 = vrot.lane.b32.xlu0 %v736, 28
      %v1088 = vpop.permute.xlu0 %1087
      %1089 = vrot.lane.b32.xlu0 %v748, 28
      %v1090 = vpop.permute.xlu0 %1089
      %1091 = vrot.lane.b32.xlu0 %v760, 28
      %v1092 = vpop.permute.xlu0 %1091
      %1093 = vrot.lane.b32.xlu0 %v772, 28
      %v1094 = vpop.permute.xlu0 %1093
      %1095 = vrot.lane.b32.xlu0 %v784, 28
      %v1096 = vpop.permute.xlu0 %1095
      %1097 = vrot.lane.b32.xlu0 %v949, 28
      %v1098 = vpop.permute.xlu0 %1097
      %1099 = vrot.lane.b32.xlu0 %v1068, 28
      %v1100 = vpop.permute.xlu0 %1099
      %v1101 = vrot.slane %v1021, 1
      %v1102 = vrot.slane %v1056, 1
      %v1103 = vsel %vm817, %v1101, %v1102
      %1104 = vrot.lane.b32.xlu0 %v826, 32
      %v1105 = vpop.permute.xlu0 %1104
      %1106 = vrot.lane.b32.xlu0 %v829, 32
      %v1107 = vpop.permute.xlu0 %1106
      %1108 = vrot.lane.b32.xlu0 %v832, 32
      %v1109 = vpop.permute.xlu0 %1108
      %1110 = vrot.lane.b32.xlu0 %v835, 32
      %v1111 = vpop.permute.xlu0 %1110
      %1112 = vrot.lane.b32.xlu0 %v838, 32
      %v1113 = vpop.permute.xlu0 %1112
      %1114 = vrot.lane.b32.xlu0 %v841, 32
      %v1115 = vpop.permute.xlu0 %1114
      %1116 = vrot.lane.b32.xlu0 %v844, 32
      %v1117 = vpop.permute.xlu0 %1116
      %1118 = vrot.lane.b32.xlu0 %v847, 32
      %v1119 = vpop.permute.xlu0 %1118
      %1120 = vrot.lane.b32.xlu0 %v850, 32
      %v1121 = vpop.permute.xlu0 %1120
      %1122 = vrot.lane.b32.xlu0 %v853, 32
      %v1123 = vpop.permute.xlu0 %1122
      %1124 = vrot.lane.b32.xlu0 %v856, 32
      %v1125 = vpop.permute.xlu0 %1124
      %1126 = vrot.lane.b32.xlu0 %v859, 32
      %v1127 = vpop.permute.xlu0 %1126
      %1128 = vrot.lane.b32.xlu0 %v862, 32
      %v1129 = vpop.permute.xlu0 %1128
      %1130 = vrot.lane.b32.xlu0 %v865, 32
      %v1131 = vpop.permute.xlu0 %1130
      %1132 = vrot.lane.b32.xlu0 %v984, 32
      %v1133 = vpop.permute.xlu0 %1132
      %1134 = vrot.lane.b32.xlu0 %v1103, 32
      %v1135 = vpop.permute.xlu0 %1134
      %vm1136 = vcmask 31744
      %v1138 = vsel %vm1136, %v528, %v786
      %v1140 = vsel %vm1136, %v529, %v788
      %v1142 = vsel %vm1136, %v530, %v790
      %v1144 = vsel %vm1136, %v531, %v792
      %v1146 = vsel %vm1136, %v532, %v794
      %v1148 = vsel %vm1136, %v533, %v796
      %v1150 = vsel %vm1136, %v534, %v798
      %v1152 = vsel %vm1136, %v535, %v800
      %v1154 = vsel %vm1136, %v536, %v802
      %v1156 = vsel %vm1136, %v537, %v804
      %v1158 = vsel %vm1136, %v538, %v806
      %v1160 = vsel %vm1136, %v539, %v808
      %v1162 = vsel %vm1136, %v540, %v810
      %v1164 = vsel %vm1136, %v541, %v812
      %v1166 = vsel %vm1136, %v542, %v814
      %v1168 = vsel %vm1136, %v543, %v816
      %vm1169 = vcmask 64512
      %v1171 = vsel %vm1169, %v1138, %v867
      %v1173 = vsel %vm1169, %v1140, %v869
      %v1175 = vsel %vm1169, %v1142, %v871
      %v1177 = vsel %vm1169, %v1144, %v873
      %v1179 = vsel %vm1169, %v1146, %v875
      %v1181 = vsel %vm1169, %v1148, %v877
      %v1183 = vsel %vm1169, %v1150, %v879
      %v1185 = vsel %vm1169, %v1152, %v881
      %v1187 = vsel %vm1169, %v1154, %v883
      %v1189 = vsel %vm1169, %v1156, %v885
      %v1191 = vsel %vm1169, %v1158, %v887
      %v1193 = vsel %vm1169, %v1160, %v889
      %v1195 = vsel %vm1169, %v1162, %v891
      %v1197 = vsel %vm1169, %v1164, %v893
      %v1199 = vsel %vm1169, %v1166, %v895
      %v1201 = vsel %vm1169, %v1168, %v897
      %vm1202 = vcmask 97280
      %v1204 = vsel %vm1202, %v1171, %v904
      %v1206 = vsel %vm1202, %v1173, %v906
      %v1208 = vsel %vm1202, %v1175, %v908
      %v1210 = vsel %vm1202, %v1177, %v910
      %v1212 = vsel %vm1202, %v1179, %v912
      %v1214 = vsel %vm1202, %v1181, %v914
      %v1216 = vsel %vm1202, %v1183, %v916
      %v1218 = vsel %vm1202, %v1185, %v918
      %v1220 = vsel %vm1202, %v1187, %v920
      %v1222 = vsel %vm1202, %v1189, %v922
      %v1224 = vsel %vm1202, %v1191, %v924
      %v1226 = vsel %vm1202, %v1193, %v926
      %v1228 = vsel %vm1202, %v1195, %v928
      %v1230 = vsel %vm1202, %v1197, %v930
      %v1232 = vsel %vm1202, %v1199, %v932
      %v1234 = vsel %vm1202, %v1201, %v934
      %vm1235 = vcmask 130048
      %v1237 = vsel %vm1235, %v1204, %v951
      %v1239 = vsel %vm1235, %v1206, %v953
      %v1241 = vsel %vm1235, %v1208, %v955
      %v1243 = vsel %vm1235, %v1210, %v957
      %v1245 = vsel %vm1235, %v1212, %v959
      %v1247 = vsel %vm1235, %v1214, %v961
      %v1249 = vsel %vm1235, %v1216, %v963
      %v1251 = vsel %vm1235, %v1218, %v965
      %v1253 = vsel %vm1235, %v1220, %v967
      %v1255 = vsel %vm1235, %v1222, %v969
      %v1257 = vsel %vm1235, %v1224, %v971
      %v1259 = vsel %vm1235, %v1226, %v973
      %v1261 = vsel %vm1235, %v1228, %v975
      %v1263 = vsel %vm1235, %v1230, %v977
      %v1265 = vsel %vm1235, %v1232, %v979
      %v1267 = vsel %vm1235, %v1234, %v981
      %vm1268 = vcmask 162816
      %v1270 = vsel %vm1268, %v1237, %v986
      %v1272 = vsel %vm1268, %v1239, %v988
      %v1274 = vsel %vm1268, %v1241, %v990
      %v1276 = vsel %vm1268, %v1243, %v992
      %v1278 = vsel %vm1268, %v1245, %v994
      %v1280 = vsel %vm1268, %v1247, %v996
      %v1282 = vsel %vm1268, %v1249, %v998
      %v1284 = vsel %vm1268, %v1251, %v1000
      %v1286 = vsel %vm1268, %v1253, %v1002
      %v1288 = vsel %vm1268, %v1255, %v1004
      %v1290 = vsel %vm1268, %v1257, %v1006
      %v1292 = vsel %vm1268, %v1259, %v1008
      %v1294 = vsel %vm1268, %v1261, %v1010
      %v1296 = vsel %vm1268, %v1263, %v1012
      %v1298 = vsel %vm1268, %v1265, %v1014
      %v1300 = vsel %vm1268, %v1267, %v1016
      %vm1301 = vcmask 195584
      %v1303 = vsel %vm1301, %v1270, %v1023
      %v1305 = vsel %vm1301, %v1272, %v1025
      %v1307 = vsel %vm1301, %v1274, %v1027
      %v1309 = vsel %vm1301, %v1276, %v1029
      %v1311 = vsel %vm1301, %v1278, %v1031
      %v1313 = vsel %vm1301, %v1280, %v1033
      %v1315 = vsel %vm1301, %v1282, %v1035
      %v1317 = vsel %vm1301, %v1284, %v1037
      %v1319 = vsel %vm1301, %v1286, %v1039
      %v1321 = vsel %vm1301, %v1288, %v1041
      %v1323 = vsel %vm1301, %v1290, %v1043
      %v1325 = vsel %vm1301, %v1292, %v1045
      %v1327 = vsel %vm1301, %v1294, %v1047
      %v1329 = vsel %vm1301, %v1296, %v1049
      %v1331 = vsel %vm1301, %v1298, %v1051
      %v1333 = vsel %vm1301, %v1300, %v1053
      %vm1334 = vcmask 228352
      %v1336 = vsel %vm1334, %v1303, %v1070
      %v1338 = vsel %vm1334, %v1305, %v1072
      %v1340 = vsel %vm1334, %v1307, %v1074
      %v1342 = vsel %vm1334, %v1309, %v1076
      %v1344 = vsel %vm1334, %v1311, %v1078
      %v1346 = vsel %vm1334, %v1313, %v1080
      %v1348 = vsel %vm1334, %v1315, %v1082
      %v1350 = vsel %vm1334, %v1317, %v1084
      %v1352 = vsel %vm1334, %v1319, %v1086
      %v1354 = vsel %vm1334, %v1321, %v1088
      %v1356 = vsel %vm1334, %v1323, %v1090
      %v1358 = vsel %vm1334, %v1325, %v1092
      %v1360 = vsel %vm1334, %v1327, %v1094
      %v1362 = vsel %vm1334, %v1329, %v1096
      %v1364 = vsel %vm1334, %v1331, %v1098
      %v1366 = vsel %vm1334, %v1333, %v1100
      %vm1367 = vcmask 261120
      %v1369 = vsel %vm1367, %v1336, %v1105
      %v1371 = vsel %vm1367, %v1338, %v1107
      %v1373 = vsel %vm1367, %v1340, %v1109
      %v1375 = vsel %vm1367, %v1342, %v1111
      %v1377 = vsel %vm1367, %v1344, %v1113
      %v1379 = vsel %vm1367, %v1346, %v1115
      %v1381 = vsel %vm1367, %v1348, %v1117
      %v1383 = vsel %vm1367, %v1350, %v1119
      %v1385 = vsel %vm1367, %v1352, %v1121
      %v1387 = vsel %vm1367, %v1354, %v1123
      %v1389 = vsel %vm1367, %v1356, %v1125
      %v1391 = vsel %vm1367, %v1358, %v1127
      %v1393 = vsel %vm1367, %v1360, %v1129
      %v1395 = vsel %vm1367, %v1362, %v1131
      %v1397 = vsel %vm1367, %v1364, %v1133
      %v1399 = vsel %vm1367, %v1366, %v1135
      %v1400 = vld [vmem:[%s3] sm:$0xf]
      %v1401 = vld [vmem:[%s3 + $0x4] sm:$0xf]
      %v1402 = vld [vmem:[%s3 + $0x8] sm:$0xf]
      %v1403 = vld [vmem:[%s3 + $0xc] sm:$0xf]
      %v1404 = vld [vmem:[%s3 + $0x10] sm:$0x3]
      %v1410 = vunpack.c.l.b16 %v1400
      %v1411 = vunpack.c.l.b16 %v1401
      %v1412 = vunpack.c.l.b16 %v1402
      %v1413 = vunpack.c.l.b16 %v1403
      %v1414 = vunpack.c.l.b16 %v1404
      %v1415 = vpack.c.b16 %v1411, %v1410
      %v1416 = vpack.c.b16 %v1413, %v1412
      %v1417 = vpack.c.b16 %v1414, %v1414
      %vm1420 = vcmask 293888
      %v1421 = vsel %vm1420, %v1369, 0
      %v1423 = vsel %vm1420, %v1371, 0
      %v1425 = vsel %vm1420, %v1373, 0
      %v1427 = vsel %vm1420, %v1375, 0
      %v1429 = vsel %vm1420, %v1377, 0
      %v1431 = vsel %vm1420, %v1379, 0
      %v1433 = vsel %vm1420, %v1381, 0
      %v1435 = vsel %vm1420, %v1383, 0
      %v1437 = vsel %vm1420, %v1385, 0
      %v1439 = vsel %vm1420, %v1387, 0
      %v1441 = vsel %vm1420, %v1389, 0
      %v1443 = vsel %vm1420, %v1391, 0
      %v1445 = vsel %vm1420, %v1393, 0
      %v1447 = vsel %vm1420, %v1395, 0
      %v1449 = vsel %vm1420, %v1397, 0
      %v1451 = vsel %vm1420, %v1399, 0
      %vm1453 = vcmask 1041408
      %v1455 = vsel %vm1453, %v1417, 0
      %1457 = vmatprep.subr.bf16.mxu0 0
      %1458 = vmatpush1.bf16.msra.mxu0 %v1415
      %1459 = vmatprep.subr.bf16.mxu0 0
      %1460 = vmatpush1.bf16.msra.mxu0 %v1416
      %1461 = vmatprep.subr.bf16.mxu0 0
      %1462 = vmatpush1.bf16.msra.mxu0 %v1455
      %1463 = vmatprep.subr.bf16.mxu0 0
      %1464 = vmatpush1.bf16.msra.mxu0 0
      %1465 = vmatprep.subr.bf16.mxu0 0
      %1466 = vmatpush1.bf16.msra.mxu0 0
      %1467 = vmatprep.subr.bf16.mxu0 0
      %1468 = vmatpush1.bf16.msra.mxu0 0
      %1469 = vmatprep.subr.bf16.mxu0 0
      %1470 = vmatpush1.bf16.msra.mxu0 0
      %1471 = vmatprep.subr.bf16.mxu0 0
      %1472 = vmatpush1.bf16.msra.mxu0 0
      %1473 = vmatprep.subr.bf16.mxu0 0
      %1474 = vmatpush1.bf16.msra.mxu0 0
      %1475 = vmatprep.subr.bf16.mxu0 0
      %1476 = vmatpush1.bf16.msra.mxu0 0
      %1477 = vmatprep.subr.bf16.mxu0 0
      %1478 = vmatpush1.bf16.msra.mxu0 0
      %1479 = vmatprep.subr.bf16.mxu0 0
      %1480 = vmatpush1.bf16.msra.mxu0 0
      %1481 = vmatprep.subr.bf16.mxu0 0
      %1482 = vmatpush1.bf16.msra.mxu0 0
      %1483 = vmatprep.subr.bf16.mxu0 0
      %1484 = vmatpush1.bf16.msra.mxu0 0
      %1485 = vmatprep.subr.bf16.mxu0 0
      %1486 = vmatpush1.bf16.msra.mxu0 0
      %1487 = vmatprep.subr.bf16.mxu0 0
      %1488 = vmatpush1.bf16.msra.mxu0 0
      %1489 = vmatprep.mubr.bf16.mxu0 0
      %1490 = vmatmul.mubr.bf16.gmra.mrb[0].mxu0 %v1421
      %v1491 = vpop.f32.mrb[0].mxu0
      %v1492 = vadd.f32 0.0, %v1491
      %v1493 = vpop.f32.mrb[0].mxu0
      %v1494 = vpop.f32.mrb[0].mxu0
      %v1495 = vadd.f32 0.0, %v1494
      %v1496 = vpop.f32.mrb[0].mxu0
      %1497 = vmatprep.mubr.bf16.mxu0 0
      %1498 = vmatmul.mubr.bf16.gmra.mrb[0].mxu0 %v1423
      %v1499 = vpop.f32.mrb[0].mxu0
      %v1500 = vadd.f32 0.0, %v1499
      %v1501 = vpop.f32.mrb[0].mxu0
      %v1502 = vpop.f32.mrb[0].mxu0
      %v1503 = vadd.f32 0.0, %v1502
      %v1504 = vpop.f32.mrb[0].mxu0
      %1505 = vmatprep.mubr.bf16.mxu0 0
      %1506 = vmatmul.mubr.bf16.gmra.mrb[0].mxu0 %v1425
      %v1507 = vpop.f32.mrb[0].mxu0
      %v1508 = vadd.f32 0.0, %v1507
      %v1509 = vpop.f32.mrb[0].mxu0
      %v1510 = vpop.f32.mrb[0].mxu0
      %v1511 = vadd.f32 0.0, %v1510
      %v1512 = vpop.f32.mrb[0].mxu0
      %1513 = vmatprep.mubr.bf16.mxu0 0
      %1514 = vmatmul.mubr.bf16.gmra.mrb[0].mxu0 %v1427
      %v1515 = vpop.f32.mrb[0].mxu0
      %v1516 = vadd.f32 0.0, %v1515
      %v1517 = vpop.f32.mrb[0].mxu0
      %v1518 = vpop.f32.mrb[0].mxu0
      %v1519 = vadd.f32 0.0, %v1518
      %v1520 = vpop.f32.mrb[0].mxu0
      %1521 = vmatprep.mubr.bf16.mxu0 0
      %1522 = vmatmul.mubr.bf16.gmra.mrb[0].mxu0 %v1429
      %v1523 = vpop.f32.mrb[0].mxu0
      %v1524 = vadd.f32 0.0, %v1523
      %v1525 = vpop.f32.mrb[0].mxu0
      %v1526 = vpop.f32.mrb[0].mxu0
      %v1527 = vadd.f32 0.0, %v1526
      %v1528 = vpop.f32.mrb[0].mxu0
      %1529 = vmatprep.mubr.bf16.mxu0 0
      %1530 = vmatmul.mubr.bf16.gmra.mrb[0].mxu0 %v1431
      %v1531 = vpop.f32.mrb[0].mxu0
      %v1532 = vadd.f32 0.0, %v1531
      %v1533 = vpop.f32.mrb[0].mxu0
      %v1534 = vpop.f32.mrb[0].mxu0
      %v1535 = vadd.f32 0.0, %v1534
      %v1536 = vpop.f32.mrb[0].mxu0
      %1537 = vmatprep.mubr.bf16.mxu0 0
      %1538 = vmatmul.mubr.bf16.gmra.mrb[0].mxu0 %v1433
      %v1539 = vpop.f32.mrb[0].mxu0
      %v1540 = vadd.f32 0.0, %v1539
      %v1541 = vpop.f32.mrb[0].mxu0
      %v1542 = vpop.f32.mrb[0].mxu0
      %v1543 = vadd.f32 0.0, %v1542
      %v1544 = vpop.f32.mrb[0].mxu0
      %1545 = vmatprep.mubr.bf16.mxu0 0
      %1546 = vmatmul.mubr.bf16.gmra.mrb[0].mxu0 %v1435
      %v1547 = vpop.f32.mrb[0].mxu0
      %v1548 = vadd.f32 0.0, %v1547
      %v1549 = vpop.f32.mrb[0].mxu0
      %v1550 = vpop.f32.mrb[0].mxu0
      %v1551 = vadd.f32 0.0, %v1550
      %v1552 = vpop.f32.mrb[0].mxu0
      %1553 = vmatprep.mubr.bf16.mxu0 0
      %1554 = vmatmul.mubr.bf16.gmra.mrb[0].mxu0 %v1437
      %v1555 = vpop.f32.mrb[0].mxu0
      %v1556 = vadd.f32 0.0, %v1555
      %v1557 = vpop.f32.mrb[0].mxu0
      %v1558 = vpop.f32.mrb[0].mxu0
      %v1559 = vadd.f32 0.0, %v1558
      %v1560 = vpop.f32.mrb[0].mxu0
      %1561 = vmatprep.mubr.bf16.mxu0 0
      %1562 = vmatmul.mubr.bf16.gmra.mrb[0].mxu0 %v1439
      %v1563 = vpop.f32.mrb[0].mxu0
      %v1564 = vadd.f32 0.0, %v1563
      %v1565 = vpop.f32.mrb[0].mxu0
      %v1566 = vpop.f32.mrb[0].mxu0
      %v1567 = vadd.f32 0.0, %v1566
      %v1568 = vpop.f32.mrb[0].mxu0
      %1569 = vmatprep.mubr.bf16.mxu0 0
      %1570 = vmatmul.mubr.bf16.gmra.mrb[0].mxu0 %v1441
      %v1571 = vpop.f32.mrb[0].mxu0
      %v1572 = vadd.f32 0.0, %v1571
      %v1573 = vpop.f32.mrb[0].mxu0
      %v1574 = vpop.f32.mrb[0].mxu0
      %v1575 = vadd.f32 0.0, %v1574
      %v1576 = vpop.f32.mrb[0].mxu0
      %1577 = vmatprep.mubr.bf16.mxu0 0
      %1578 = vmatmul.mubr.bf16.gmra.mrb[0].mxu0 %v1443
      %v1579 = vpop.f32.mrb[0].mxu0
      %v1580 = vadd.f32 0.0, %v1579
      %v1581 = vpop.f32.mrb[0].mxu0
      %v1582 = vpop.f32.mrb[0].mxu0
      %v1583 = vadd.f32 0.0, %v1582
      %v1584 = vpop.f32.mrb[0].mxu0
      %1585 = vmatprep.mubr.bf16.mxu0 0
      %1586 = vmatmul.mubr.bf16.gmra.mrb[0].mxu0 %v1445
      %v1587 = vpop.f32.mrb[0].mxu0
      %v1588 = vadd.f32 0.0, %v1587
      %v1589 = vpop.f32.mrb[0].mxu0
      %v1590 = vpop.f32.mrb[0].mxu0
      %v1591 = vadd.f32 0.0, %v1590
      %v1592 = vpop.f32.mrb[0].mxu0
      %1593 = vmatprep.mubr.bf16.mxu0 0
      %1594 = vmatmul.mubr.bf16.gmra.mrb[0].mxu0 %v1447
      %v1595 = vpop.f32.mrb[0].mxu0
      %v1596 = vadd.f32 0.0, %v1595
      %v1597 = vpop.f32.mrb[0].mxu0
      %v1598 = vpop.f32.mrb[0].mxu0
      %v1599 = vadd.f32 0.0, %v1598
      %v1600 = vpop.f32.mrb[0].mxu0
      %1601 = vmatprep.mubr.bf16.mxu0 0
      %1602 = vmatmul.mubr.bf16.gmra.mrb[0].mxu0 %v1449
      %v1603 = vpop.f32.mrb[0].mxu0
      %v1604 = vadd.f32 0.0, %v1603
      %v1605 = vpop.f32.mrb[0].mxu0
      %v1606 = vpop.f32.mrb[0].mxu0
      %v1607 = vadd.f32 0.0, %v1606
      %v1608 = vpop.f32.mrb[0].mxu0
      %1609 = vmatprep.mubr.bf16.mxu0 0
      %1610 = vmatmul.mubr.bf16.gmra.mrb[0].mxu0 %v1451
      %v1611 = vpop.f32.mrb[0].mxu0
      %v1612 = vadd.f32 0.0, %v1611
      %v1613 = vpop.f32.mrb[0].mxu0
      %v1614 = vpop.f32.mrb[0].mxu0
      %v1615 = vadd.f32 0.0, %v1614
      %v1616 = vpop.f32.mrb[0].mxu0
      %1617 = vdwg.mxu0
      %1618 = vst [vmem:[%s400] sm:$0xff] %v1492
      %1619 = vst [vmem:[%s400 + $0x8] sm:$0xff] %v1495
      %1620 = vst [vmem:[%s400 + $0x10] sm:$0xff] %v1500
      %1621 = vst [vmem:[%s400 + $0x18] sm:$0xff] %v1503
      %1622 = vst [vmem:[%s400 + $0x20] sm:$0xff] %v1508
      %1623 = vst [vmem:[%s400 + $0x28] sm:$0xff] %v1511
      %1624 = vst [vmem:[%s400 + $0x30] sm:$0xff] %v1516
      %1625 = vst [vmem:[%s400 + $0x38] sm:$0xff] %v1519
      %1626 = vst [vmem:[%s400 + $0x40] sm:$0xff] %v1524
      %1627 = vst [vmem:[%s400 + $0x48] sm:$0xff] %v1527
      %1628 = vst [vmem:[%s400 + $0x50] sm:$0xff] %v1532
      %1629 = vst [vmem:[%s400 + $0x58] sm:$0xff] %v1535
      %1630 = vst [vmem:[%s400 + $0x60] sm:$0xff] %v1540
      %1631 = vst [vmem:[%s400 + $0x68] sm:$0xff] %v1543
      %1632 = vst [vmem:[%s400 + $0x70] sm:$0xff] %v1548
      %1633 = vst [vmem:[%s400 + $0x78] sm:$0xff] %v1551
      %1634 = vst [vmem:[%s400 + $0x80] sm:$0xff] %v1556
      %1635 = vst [vmem:[%s400 + $0x88] sm:$0xff] %v1559
      %1636 = vst [vmem:[%s400 + $0x90] sm:$0xff] %v1564
      %1637 = vst [vmem:[%s400 + $0x98] sm:$0xff] %v1567
      %1638 = vst [vmem:[%s400 + $0xa0] sm:$0xff] %v1572
      %1639 = vst [vmem:[%s400 + $0xa8] sm:$0xff] %v1575
      %1640 = vst [vmem:[%s400 + $0xb0] sm:$0xff] %v1580
      %1641 = vst [vmem:[%s400 + $0xb8] sm:$0xff] %v1583
      %1642 = vst [vmem:[%s400 + $0xc0] sm:$0xff] %v1588
      %1643 = vst [vmem:[%s400 + $0xc8] sm:$0xff] %v1591
      %1644 = vst [vmem:[%s400 + $0xd0] sm:$0xff] %v1596
      %1645 = vst [vmem:[%s400 + $0xd8] sm:$0xff] %v1599
      %1646 = vst [vmem:[%s400 + $0xe0] sm:$0xff] %v1604
      %1647 = vst [vmem:[%s400 + $0xe8] sm:$0xff] %v1607
      %1648 = vst [vmem:[%s400 + $0xf0] sm:$0xff] %v1612
      %1649 = vst [vmem:[%s400 + $0xf8] sm:$0xff] %v1615
      %v1650 = vadd.f32 %v1492, %v1495
      %v1651 = vadd.f32 %v1650, %v1500
      %v1652 = vadd.f32 %v1651, %v1503
      %v1653 = vadd.f32 %v1652, %v1508
      %v1654 = vadd.f32 %v1653, %v1511
      %v1655 = vadd.f32 %v1654, %v1516
      %v1656 = vadd.f32 %v1655, %v1519
      %v1657 = vadd.f32 %v1656, %v1524
      %v1658 = vadd.f32 %v1657, %v1527
      %v1659 = vadd.f32 %v1658, %v1532
      %v1660 = vadd.f32 %v1659, %v1535
      %v1661 = vadd.f32 %v1660, %v1540
      %v1662 = vadd.f32 %v1661, %v1543
      %v1663 = vadd.f32 %v1662, %v1548
      %v1664 = vadd.f32 %v1663, %v1551
      %v1665 = vadd.f32 %v1664, %v1556
      %v1666 = vadd.f32 %v1665, %v1559
      %v1667 = vadd.f32 %v1666, %v1564
      %v1668 = vadd.f32 %v1667, %v1567
      %v1669 = vadd.f32 %v1668, %v1572
      %v1670 = vadd.f32 %v1669, %v1575
      %v1671 = vadd.f32 %v1670, %v1580
      %v1672 = vadd.f32 %v1671, %v1583
      %v1673 = vadd.f32 %v1672, %v1588
      %v1674 = vadd.f32 %v1673, %v1591
      %v1675 = vadd.f32 %v1674, %v1596
      %v1676 = vadd.f32 %v1675, %v1599
      %v1677 = vadd.f32 %v1676, %v1604
      %v1678 = vadd.f32 %v1677, %v1607
      %v1679 = vadd.f32 %v1678, %v1612
      %v1680 = vadd.f32 %v1679, %v1615
      %v1681 = vrot.slane %v1680, 4
      %v1682 = vadd.f32 %v1680, %v1681
      %v1683 = vrot.slane %v1682, 2
      %v1684 = vadd.f32 %v1682, %v1683
      %v1685 = vrot.slane %v1684, 1
      %v1686 = vadd.f32 %v1684, %v1685
      %v1687 = vmul.f32 %v1492, %v1492
      %v1688 = vmul.f32 %v1495, %v1495
      %v1689 = vmul.f32 %v1500, %v1500
      %v1690 = vmul.f32 %v1503, %v1503
      %v1691 = vmul.f32 %v1508, %v1508
      %v1692 = vmul.f32 %v1511, %v1511
      %v1693 = vmul.f32 %v1516, %v1516
      %v1694 = vmul.f32 %v1519, %v1519
      %v1695 = vmul.f32 %v1524, %v1524
      %v1696 = vmul.f32 %v1527, %v1527
      %v1697 = vmul.f32 %v1532, %v1532
      %v1698 = vmul.f32 %v1535, %v1535
      %v1699 = vmul.f32 %v1540, %v1540
      %v1700 = vmul.f32 %v1543, %v1543
      %v1701 = vmul.f32 %v1548, %v1548
      %v1702 = vmul.f32 %v1551, %v1551
      %v1703 = vmul.f32 %v1556, %v1556
      %v1704 = vmul.f32 %v1559, %v1559
      %v1705 = vmul.f32 %v1564, %v1564
      %v1706 = vmul.f32 %v1567, %v1567
      %v1707 = vmul.f32 %v1572, %v1572
      %v1708 = vmul.f32 %v1575, %v1575
      %v1709 = vmul.f32 %v1580, %v1580
      %v1710 = vmul.f32 %v1583, %v1583
      %v1711 = vmul.f32 %v1588, %v1588
      %v1712 = vmul.f32 %v1591, %v1591
      %v1713 = vmul.f32 %v1596, %v1596
      %v1714 = vmul.f32 %v1599, %v1599
      %v1715 = vmul.f32 %v1604, %v1604
      %v1716 = vmul.f32 %v1607, %v1607
      %v1717 = vmul.f32 %v1612, %v1612
      %v1718 = vmul.f32 %v1615, %v1615
      %v1719 = vadd.f32 %v1687, %v1688
      %v1720 = vadd.f32 %v1719, %v1689
      %v1721 = vadd.f32 %v1720, %v1690
      %v1722 = vadd.f32 %v1721, %v1691
      %v1723 = vadd.f32 %v1722, %v1692
      %v1724 = vadd.f32 %v1723, %v1693
      %v1725 = vadd.f32 %v1724, %v1694
      %v1726 = vadd.f32 %v1725, %v1695
      %v1727 = vadd.f32 %v1726, %v1696
      %v1728 = vadd.f32 %v1727, %v1697
      %v1729 = vadd.f32 %v1728, %v1698
      %v1730 = vadd.f32 %v1729, %v1699
      %v1731 = vadd.f32 %v1730, %v1700
      %v1732 = vadd.f32 %v1731, %v1701
      %v1733 = vadd.f32 %v1732, %v1702
      %v1734 = vadd.f32 %v1733, %v1703
      %v1735 = vadd.f32 %v1734, %v1704
      %v1736 = vadd.f32 %v1735, %v1705
      %v1737 = vadd.f32 %v1736, %v1706
      %v1738 = vadd.f32 %v1737, %v1707
      %v1739 = vadd.f32 %v1738, %v1708
      %v1740 = vadd.f32 %v1739, %v1709
      %v1741 = vadd.f32 %v1740, %v1710
      %v1742 = vadd.f32 %v1741, %v1711
      %v1743 = vadd.f32 %v1742, %v1712
      %v1744 = vadd.f32 %v1743, %v1713
      %v1745 = vadd.f32 %v1744, %v1714
      %v1746 = vadd.f32 %v1745, %v1715
      %v1747 = vadd.f32 %v1746, %v1716
      %v1748 = vadd.f32 %v1747, %v1717
      %v1749 = vadd.f32 %v1748, %v1718
      %v1750 = vrot.slane %v1749, 4
      %v1751 = vadd.f32 %v1749, %v1750
      %v1752 = vrot.slane %v1751, 2
      %v1753 = vadd.f32 %v1751, %v1752
      %v1754 = vrot.slane %v1753, 1
      %v1755 = vadd.f32 %v1753, %v1754
      %vm1756 = vcmask 1040384
      %v1757 = vsel %vm1756, %v1686, %v1755
      %1758 = vst [vmem:[%s408] sm:$0x3] %v1757
      %s1759 = smul.u32 16, %s22
      %p1760 = scmp.lt.s32.totalorder %s21, 1
      %s1761 = scalar_select %p1760, %s21, 1
      %p1762 = scmp.lt.s32.totalorder %s1759, 15
      %s1763 = scalar_select %p1762, %s1759, 15
      %s1764 = smul.addr %s1763, 2
      %s1765 = smul.addr %s1761, 32
      %s1766 = sadd.s32 %s1764, %s1765
      %s1767 = smul.addr %s1766, 8
      %s1768 = scalar_lea.vmem %s4, %s1767
      %p1769 = scmp.lt.s32.totalorder %s21, 1
      %s1770 = scalar_select %p1769, %s21, 1
      %p1771 = scmp.lt.s32.totalorder %s22, 0
      %s1772 = scalar_select %p1771, %s22, 0
      %s1773 = sadd.s32 %s1772, %s1770
      %s1774 = smul.addr %s1773, 2
      %s1775 = scalar_lea.vmem %s5, %s1774
      // Predicated region
      $region37: #{conv2d_module.2} parent=35 // pred_check
        %p1776 = pneg %p162
      $region38: #{conv2d_module.2} parent=35 // pred_check_branch
        %1778 = sbr.rel (%p1776) target = $region40
      $region39: #{conv2d_module.2} parent=35 // pred_region
        %s1779 = smul.u32 16, %s22
      $region40: #{conv2d_module.2} parent=35 // pred_fallthru
        _
      // Predicated region
      $region41: #{conv2d_module.2} parent=35 // pred_check
        %p1780 = pneg %p190
      $region42: #{conv2d_module.2} parent=35 // pred_check_branch
        %1782 = sbr.rel (%p1780) target = $region44
      $region43: #{conv2d_module.2} parent=35 // pred_region
        _
      $region44: #{conv2d_module.2} parent=35 // pred_fallthru
        _
    $region36: #{conv2d_module.2} parent=5 // pred_fallthru
      _
    %p1783 = scmp.le.s32.totalorder 2, %s12
    // Predicated region
    $region45: #{conv2d_module.2} parent=5 // pred_check
      %p1784 = pneg %p1783
    $region46: #{conv2d_module.2} parent=5 // pred_check_branch
      %1786 = sbr.rel (%p1784) target = $region48
    $region47: #{conv2d_module.2} parent=5 // pred_region
      %s1787 = ssub.s32 %s12, 2
      // Predicated region
      $region49: #{conv2d_module.2} parent=47 // pred_check
        %p1788 = pneg %p168
      $region50: #{conv2d_module.2} parent=47 // pred_check_branch
        %1790 = sbr.rel (%p1788) target = $region52
      $region51: #{conv2d_module.2} parent=47 // pred_region
        %s1791 = smul.u32 16, %s24
        %p1792 = scmp.lt.s32.totalorder %s23, 1
        %s1793 = scalar_select %p1792, %s23, 1
        %p1794 = scmp.lt.s32.totalorder %s1791, 15
        %s1795 = scalar_select %p1794, %s1791, 15
        %s1796 = smul.addr %s1795, 2
        %s1797 = smul.addr %s1793, 32
        %s1798 = sadd.s32 %s1796, %s1797
        %s1799 = smul.addr %s1798, 8
        %s1800 = scalar_lea.vmem %s4, %s1799
      $region52: #{conv2d_module.2} parent=47 // pred_fallthru
        _
      // Predicated region
      $region53: #{conv2d_module.2} parent=47 // pred_check
        %p1801 = pneg %p196
      $region54: #{conv2d_module.2} parent=47 // pred_check_branch
        %1803 = sbr.rel (%p1801) target = $region56
      $region55: #{conv2d_module.2} parent=47 // pred_region
        %p1804 = scmp.lt.s32.totalorder %s23, 1
        %s1805 = scalar_select %p1804, %s23, 1
        %p1806 = scmp.lt.s32.totalorder %s24, 0
        %s1807 = scalar_select %p1806, %s24, 0
        %s1808 = sadd.s32 %s1807, %s1805
        %s1809 = smul.addr %s1808, 2
        %s1810 = scalar_lea.vmem %s5, %s1809
      $region56: #{conv2d_module.2} parent=47 // pred_fallthru
        _
    $region48: #{conv2d_module.2} parent=5 // pred_fallthru
      _
  $region6: #{conv2d_module.2} parent=0 // loop_footer
    %s16 = sadd.s32 1, %s12
  $region7: #{conv2d_module.2} parent=0 // loop_footer_branch
    %11 = sbr.rel target = $region3
  $region8: #{conv2d_module.2} parent=0 // loop_exit
    _

</llo_original>
